<compile_context>
chip_gen: v7x
topology: tpu7x:2x2x1
jax: 0.10.0
libtpu: 0.0.40
codegen_flags: <defaults>
</compile_context>

<pallas_src>
import functools

import jax
import jax.numpy as jnp
from jax import lax
from jax.experimental import pallas as pl
from jax.experimental.pallas import tpu as pltpu

_EPS = 1e-3
_NEG = -1e30                    # "minus infinity" for MaxPool padding
_MATMUL_DTYPE = jnp.bfloat16    # MXU input dtype; accumulation stays float32
_BRANCHES = ("c0l", "c1l", "c2l", "c2r", "c3l", "c4l")
_KMAX = 8                       # depthwise taps padded to this many lanes


def _round_up(x, m):
    return (x + m - 1) // m * m


def _pick_lane_block(w_total, lh):
    # Block boundaries must coincide with per-sequence segment boundaries so
    # in-block shifts never need halo data, and stay lane-dense (mult of 128).
    for wb in (1024, 512, 256, 128):
        if wb <= w_total and w_total % wb == 0 and wb % lh == 0:
            return wb
    return w_total


# ----------------------------------------------------------------------------
# Fused CellStem0 kernel.  Activations are (Cp, Wb) tiles: channels on
# sublanes, batch * (L/2) folded onto lanes (even/odd phase streams).
# Packed-parameter indexing (all offsets are multiples of Cp, Cp % 8 == 0):
#   pointwise / shift idx: 0 = conv_1x1, 1 = comb_iter_0_right conv,
#                          2 = comb_iter_4_right conv,
#                          3+2b / 4+2b = branch b separable_1 / separable_2.
#   depthwise idx:         2b / 2b+1   = branch b depthwise_1 / depthwise_2.
# ----------------------------------------------------------------------------
def _cell_stem0_kernel(xe_ref, xo_ref, pw_ref, dw_ref, sh_ref, out_ref, *,
                       cp, lh, ks):
    wb = xe_ref.shape[-1]

    # Per-lane position inside its length-`lh` sequence segment.  Shifted taps
    # that fall outside the segment are exactly Conv1d's zero padding (or the
    # maxpool's -inf padding), so they get masked to the fill value.
    pos = lax.broadcasted_iota(jnp.int32, (1, wb), 1) % lh
    mask_cache = {}

    def shifted(x, d, fill=0.0):
        # out[:, i] = x[:, i + d] within the same segment, else `fill`.
        if d == 0:
            return x
        if d not in mask_cache:
            mask_cache[d] = (pos + d >= 0) & (pos + d < lh)
        # Static lane rotate (jnp.roll == pltpu.roll for static shifts): cheap
        # XLU work, no MXU.  Wrapped / cross-seam lanes are fixed by the mask.
        rolled = jnp.roll(x, -d, axis=1)
        return jnp.where(mask_cache[d], rolled, fill)

    def tree_sum(terms):
        while len(terms) > 1:
            nxt = [a + b for a, b in zip(terms[0::2], terms[1::2])]
            if len(terms) % 2:
                nxt.append(terms[-1])
            terms = nxt
        return terms[0]

    def pw(idx, x):
        # Pointwise conv (BN scale pre-folded into the weight) + BN shift.
        w = pw_ref[idx * cp:(idx + 1) * cp, :]
        y = jnp.dot(w.astype(_MATMUL_DTYPE), x.astype(_MATMUL_DTYPE),
                    preferred_element_type=jnp.float32)
        return y + sh_ref[:, idx:idx + 1]

    def depthwise_s2(xe, xo, widx, k):
        # Depthwise conv, stride 2, padding k//2, on the even/odd streams:
        #   x[2j + d] == xe[j + d//2]  (d even)   |   xo[j + (d-1)//2]  (d odd)
        w = dw_ref[widx * cp:(widx + 1) * cp, :]
        p = k // 2
        terms = []
        for t in range(k):
            d = t - p
            src, hd = (xe, d // 2) if d % 2 == 0 else (xo, (d - 1) // 2)
            terms.append(w[:, t:t + 1] * shifted(src, hd))
        return tree_sum(terms)

    def depthwise_s1(x, widx, k):
        # Depthwise conv, stride 1, padding k//2, on a half-length stream.
        w = dw_ref[widx * cp:(widx + 1) * cp, :]
        p = k // 2
        return tree_sum([w[:, t:t + 1] * shifted(x, t - p) for t in range(k)])

    def maxpool(xe, xo):
        # MaxPool1d(3, stride=2, padding=1): max(x[2j-1], x[2j], x[2j+1]).
        return jnp.maximum(jnp.maximum(xe, xo), shifted(xo, -1, _NEG))

    def branch_s2(bi, xe, xo):
        # BranchSeparables, stride-2 first separable (input already ReLU'd).
        k = ks[bi]
        h = depthwise_s2(xe, xo, 2 * bi, k)
        h = jnp.maximum(pw(3 + 2 * bi, h), 0.0)       # sep_1 + bn_1, relu_2
        h = depthwise_s1(h, 2 * bi + 1, k)
        return pw(4 + 2 * bi, h)                      # sep_2 + bn_2

    def branch_s1(bi, x):
        # BranchSeparables, stride 1 (comb_iter_3_left, half-length input).
        k = ks[bi]
        h = depthwise_s1(x, 2 * bi, k)
        h = jnp.maximum(pw(3 + 2 * bi, h), 0.0)
        h = depthwise_s1(h, 2 * bi + 1, k)
        return pw(4 + 2 * bi, h)

    xle, xlo = xe_ref[...], xo_ref[...]
    rxle, rxlo = jnp.maximum(xle, 0.0), jnp.maximum(xlo, 0.0)   # shared relu_1

    # x_right = ReluConvBn(1x1)(x_left).  Every consumer downsamples by 2, so
    # only its even/odd phase streams are ever materialized.
    xre, xro = pw(0, rxle), pw(0, rxlo)
    rxre, rxro = jnp.maximum(xre, 0.0), jnp.maximum(xro, 0.0)

    mp_left = maxpool(xle, xlo)
    mp_right = maxpool(xre, xro)

    c0 = branch_s2(0, rxle, rxlo) + pw(1, mp_left)              # comb_iter_0
    c1 = branch_s2(1, rxre, rxro) + mp_right                    # comb_iter_1
    c2 = branch_s2(2, rxre, rxro) + branch_s2(3, rxre, rxro)    # comb_iter_2
    c3 = branch_s1(4, jnp.maximum(c2, 0.0)) + mp_right          # comb_iter_3
    c4 = branch_s2(5, rxle, rxlo) + pw(2, rxre)                 # comb_iter_4

    # One full (cp, wb) tile per branch at sublane offsets that are multiples
    # of 8 -> aligned, lane-dense, unmasked stores.
    dt = out_ref.dtype
    for b, cb in enumerate((c0, c1, c2, c3, c4)):
        out_ref[b * cp:(b + 1) * cp, :] = cb.astype(dt)


# ----------------------------------------------------------------------------
# Parameter prep: fold BN scales into the pointwise weights, zero-pad every
# channel dim to Cp (multiple of 8) and pack everything into three operands.
# ----------------------------------------------------------------------------
def _prep_params(P, cp):
    def pad_w(w, s):                       # (o, i) -> (cp, cp), BN scale folded
        w = jnp.asarray(s, jnp.float32) * jnp.asarray(w, jnp.float32)
        o, i = w.shape
        return jnp.zeros((cp, cp), jnp.float32).at[:o, :i].set(w)

    def pad_b(h):                          # (c, 1) -> (cp,)
        h = jnp.asarray(h, jnp.float32)
        return jnp.zeros((cp,), jnp.float32).at[:h.shape[0]].set(h[:, 0])

    def pad_dw(w):                         # (c, k) -> (cp, _KMAX)
        w = jnp.asarray(w, jnp.float32)
        c, k = w.shape
        return jnp.zeros((cp, _KMAX), jnp.float32).at[:c, :k].set(w)

    pw_list = [pad_w(P["conv_1x1_w"], P["conv_1x1_s"]),
               pad_w(P["c0r_w"], P["c0r_s"]),
               pad_w(P["c4r_w"], P["c4r_s"])]
    sh_list = [pad_b(P["conv_1x1_h"]), pad_b(P["c0r_h"]), pad_b(P["c4r_h"])]
    dw_list, ks = [], []
    for name in _BRANCHES:
        prm = P[name]
        ks.append(int(prm["dw1"].shape[1]))
        pw_list += [pad_w(prm["pw1"], prm["s1"]), pad_w(prm["pw2"], prm["s2"])]
        sh_list += [pad_b(prm["h1"]), pad_b(prm["h2"])]
        dw_list += [pad_dw(prm["dw1"]), pad_dw(prm["dw2"])]

    pw_packed = jnp.concatenate(pw_list, axis=0)      # (15*cp, cp)
    dw_packed = jnp.concatenate(dw_list, axis=0)      # (12*cp, _KMAX)
    sh_packed = jnp.stack(sh_list, axis=1)            # (cp, 15)
    return pw_packed, dw_packed, sh_packed, tuple(ks)


# ----------------------------------------------------------------------------
# Wrapper
# ----------------------------------------------------------------------------
def cell_stem0(x_left, P, *, lane_block=None):
    """CellStem0 forward.  x_left: (N, C_in, L) float32 (NCW, like PyTorch)."""
    N, c_in, L = x_left.shape
    if L % 2 != 0:
        # TODO(synk): odd lengths need one extra masked column in the odd stream.
        raise ValueError("cell_stem0 requires an even sequence length")
    lh = L // 2
    out_right = P["conv_1x1_w"].shape[0]
    out_left = P["c0l"]["pw2"].shape[0]
    cp = _round_up(max(c_in, out_left, out_right), 8)

    pw_packed, dw_packed, sh_packed, ks = _prep_params(P, cp)

    # Split into even/odd phase streams (stride-2 becomes a stream choice),
    # fold batch onto the lane axis and pad lanes to a multiple of 128.
    w_valid = N * lh
    w_total = _round_up(w_valid, 128)

    def fold(a):                          # (N, C, lh) -> (cp, w_total)
        a = a.astype(jnp.float32).transpose(1, 0, 2).reshape(c_in, w_valid)
        return jnp.zeros((cp, w_total), jnp.float32).at[:c_in, :w_valid].set(a)

    xe = fold(x_left[:, :, 0::2])
    xo = fold(x_left[:, :, 1::2])

    wb = lane_block or _pick_lane_block(w_total, lh)
    assert w_total % wb == 0 and wb % 128 == 0 and wb % lh == 0
    grid = (w_total // wb,)
    c_out_p = 5 * cp

    kernel = functools.partial(_cell_stem0_kernel, cp=cp, lh=lh, ks=ks)
    y = pl.pallas_call(
        kernel,
        out_shape=jax.ShapeDtypeStruct((c_out_p, w_total), jnp.float32),
        grid=grid,
        in_specs=[
            pl.BlockSpec((cp, wb), lambda i: (0, i)),
            pl.BlockSpec((cp, wb), lambda i: (0, i)),
            pl.BlockSpec(pw_packed.shape, lambda i: (0, 0)),   # stay resident
            pl.BlockSpec(dw_packed.shape, lambda i: (0, 0)),
            pl.BlockSpec(sh_packed.shape, lambda i: (0, 0)),
        ],
        out_specs=pl.BlockSpec((c_out_p, wb), lambda i: (0, i)),
        compiler_params=pltpu.CompilerParams(
            dimension_semantics=("parallel",)),
    )(xe, xo, pw_packed, dw_packed, sh_packed)

    # Strip lane/channel padding; keep the PyTorch concat order
    # [c0(out_left), c1..c4(out_right)].
    y = y[:, :w_valid].reshape(c_out_p, N, lh).transpose(1, 0, 2)
    parts = [y[:, :out_left, :]]
    parts += [y[:, b * cp: b * cp + out_right, :] for b in range(1, 5)]
    return jnp.concatenate(parts, axis=1)


# ----------------------------------------------------------------------------
# Pure-JAX reference (same bf16 matmul numerics policy) — validates the
# even/odd-stream + roll/mask rewrite and the parameter packing.
# ----------------------------------------------------------------------------
def _ref_pointwise_bn(x, w, s, h):
    wf = (jnp.asarray(s, jnp.float32) * jnp.asarray(w, jnp.float32))
    y = jnp.einsum("oc,ncl->nol", wf.astype(_MATMUL_DTYPE),
                   x.astype(_MATMUL_DTYPE),
                   preferred_element_type=jnp.float32)
    return y + h[None]


def _ref_depthwise(x, w, stride, pad):
    N, C, L = x.shape
    k = w.shape[1]
    xp = jnp.pad(x, ((0, 0), (0, 0), (pad, pad)))
    L_out = (L + 2 * pad - k) // stride + 1
    out = jnp.zeros((N, C, L_out), jnp.float32)
    for t in range(k):
        sl = xp[:, :, t: t + stride * (L_out - 1) + 1: stride]
        out = out + w[None, :, t:t + 1] * sl
    return out


def _ref_maxpool(x):
    N, C, L = x.shape
    xp = jnp.pad(x, ((0, 0), (0, 0), (1, 1)), constant_values=_NEG)
    L_out = (L - 1) // 2 + 1
    out = None
    for t in range(3):
        sl = xp[:, :, t: t + 2 * (L_out - 1) + 1: 2]
        out = sl if out is None else jnp.maximum(out, sl)
    return out


def _ref_branch(x, prm, stride):
    k = prm["dw1"].shape[1]
    p = k // 2
    h = jnp.maximum(x, 0.0)
    h = _ref_depthwise(h, prm["dw1"], stride, p)
    h = _ref_pointwise_bn(h, prm["pw1"], prm["s1"], prm["h1"])
    h = jnp.maximum(h, 0.0)
    h = _ref_depthwise(h, prm["dw2"], 1, p)
    h = _ref_pointwise_bn(h, prm["pw2"], prm["s2"], prm["h2"])
    return h


def cell_stem0_reference(x, P):
    xr = _ref_pointwise_bn(jnp.maximum(x, 0.0), P["conv_1x1_w"],
                           P["conv_1x1_s"], P["conv_1x1_h"])
    mp_l, mp_r = _ref_maxpool(x), _ref_maxpool(xr)
    c0 = _ref_branch(x, P["c0l"], 2) + _ref_pointwise_bn(
        mp_l, P["c0r_w"], P["c0r_s"], P["c0r_h"])
    c1 = _ref_branch(xr, P["c1l"], 2) + mp_r
    c2 = _ref_branch(xr, P["c2l"], 2) + _ref_branch(xr, P["c2r"], 2)
    c3 = _ref_branch(c2, P["c3l"], 1) + mp_r
    c4 = _ref_branch(x, P["c4l"], 2) + _ref_pointwise_bn(
        jnp.maximum(xr, 0.0)[:, :, ::2], P["c4r_w"], P["c4r_s"], P["c4r_h"])
    return jnp.concatenate([c0, c1, c2, c3, c4], axis=1)


# ----------------------------------------------------------------------------
# Parameter initialization (deterministic, in-script)
# ----------------------------------------------------------------------------
def _w(key, shape):
    return 0.2 * jax.random.normal(key, shape, jnp.float32)


def _init_bn(key, c):
    k1, k2, k3, k4 = jax.random.split(key, 4)
    gamma = jax.random.uniform(k1, (c, 1), jnp.float32, 0.5, 1.5)
    beta = 0.1 * jax.random.normal(k2, (c, 1), jnp.float32)
    mean = 0.1 * jax.random.normal(k3, (c, 1), jnp.float32)
    var = jax.random.uniform(k4, (c, 1), jnp.float32, 0.5, 1.5)
    scale = gamma / jnp.sqrt(var + _EPS)
    shift = beta - mean * scale
    return scale, shift


def _init_branch(key, in_c, out_c, k, stem_cell=False):
    mid = out_c if stem_cell else in_c
    ks = jax.random.split(key, 6)
    s1, h1 = _init_bn(ks[2], mid)
    s2, h2 = _init_bn(ks[5], out_c)
    return dict(dw1=_w(ks[0], (in_c, k)), pw1=_w(ks[1], (mid, in_c)), s1=s1, h1=h1,
                dw2=_w(ks[3], (mid, k)), pw2=_w(ks[4], (out_c, mid)), s2=s2, h2=h2)


def init_cell_stem0(key, in_left, out_left, in_right, out_right):
    ks = jax.random.split(key, 12)
    P = {}
    P["conv_1x1_w"] = _w(ks[0], (out_right, in_right))
    P["conv_1x1_s"], P["conv_1x1_h"] = _init_bn(ks[1], out_right)
    P["c0l"] = _init_branch(ks[2], in_left, out_left, 5, stem_cell=True)
    P["c0r_w"] = _w(ks[3], (out_left, in_left))
    P["c0r_s"], P["c0r_h"] = _init_bn(ks[4], out_left)
    P["c1l"] = _init_branch(ks[5], out_right, out_right, 7)
    P["c2l"] = _init_branch(ks[6], out_right, out_right, 5)
    P["c2r"] = _init_branch(ks[7], out_right, out_right, 3)
    P["c3l"] = _init_branch(ks[8], out_right, out_right, 3)
    P["c4l"] = _init_branch(ks[9], in_right, out_right, 3, stem_cell=True)
    P["c4r_w"] = _w(ks[10], (out_right, out_right))
    P["c4r_s"], P["c4r_h"] = _init_bn(ks[11], out_right)
    return P


if __name__ == "__main__":
    key = jax.random.PRNGKey(0)
    kx, kp = jax.random.split(key)

    N, C_in, L = 2, 8, 16           # x_left: (N, C_in, L)  (NCW, like PyTorch)
    out_left, out_right = 4, 6      # CellStem0(C_in, out_left, C_in, out_right)

    x = jax.random.normal(kx, (N, C_in, L), jnp.float32)
    params = init_cell_stem0(kp, C_in, out_left, C_in, out_right)

    y = jax.jit(cell_stem0)(x, params)
    y = jax.block_until_ready(y)

    expected_shape = (N, out_left + 4 * out_right, L // 2)   # (2, 28, 8)
    assert y.shape == expected_shape, (y.shape, expected_shape)
    assert bool(jnp.all(jnp.isfinite(y)))

    # Correctness check against an independent pure-JAX reference.
    y_ref = jax.block_until_ready(cell_stem0_reference(x, params))
    max_err = float(jnp.max(jnp.abs(y - y_ref)))
    assert max_err < 2e-2, max_err

    print("KERNEL_OK")
</pallas_src>

<mosaic_0001>
module attributes {stable_mosaic.version = 11 : i64} {
  func.func @_cell_stem0_kernel(%arg0: i32, %arg1: memref<8x128xf32, #tpu.memory_space<vmem>>, %arg2: memref<8x128xf32, #tpu.memory_space<vmem>>, %arg3: memref<120x8xf32, #tpu.memory_space<vmem>>, %arg4: memref<96x8xf32, #tpu.memory_space<vmem>>, %arg5: memref<8x15xf32, #tpu.memory_space<vmem>>, %arg6: memref<40x128xf32, #tpu.memory_space<vmem>>) attributes {dimension_semantics = [#tpu.dimension_semantics<parallel>], iteration_bounds = array<i64: 1>, scalar_prefetch = 0 : i64, scratch_operands = 0 : i64, tpu.core_type = #tpu.core_type<tc>, window_params = [{transform_indices = @transform_0, window_bounds = array<i64: 8, 128>}, {transform_indices = @transform_1, window_bounds = array<i64: 8, 128>}, {pipeline_mode = #tpu.pipeline_mode<synchronous>, transform_indices = @transform_2, window_bounds = array<i64: 120, 8>}, {pipeline_mode = #tpu.pipeline_mode<synchronous>, transform_indices = @transform_3, window_bounds = array<i64: 96, 8>}, {pipeline_mode = #tpu.pipeline_mode<synchronous>, transform_indices = @transform_4, window_bounds = array<i64: 8, 15>}, {transform_indices = @transform_5, window_bounds = array<i64: 40, 128>}]} {
    %0 = tpu.iota {dimensions = array<i32: 1>} : vector<1x128xi32>
    %c8_i32 = arith.constant 8 : i32
    %c0_i32 = arith.constant 0 : i32
    %1 = arith.cmpi eq, %c8_i32, %c0_i32 : i32
    %c1_i32 = arith.constant 1 : i32
    %2 = arith.select %1, %c1_i32, %c8_i32 : i32
    %3 = vector.broadcast %2 : i32 to vector<1x128xi32>
    %4 = arith.remsi %0, %3 : vector<1x128xi32>
    %c0_i32_0 = arith.constant 0 : i32
    %5 = vector.broadcast %c0_i32_0 : i32 to vector<1x128xi32>
    %6 = arith.cmpi ne, %4, %5 : vector<1x128xi32>
    %c0_i32_1 = arith.constant 0 : i32
    %7 = vector.broadcast %c0_i32_1 : i32 to vector<1x128xi32>
    %8 = arith.cmpi slt, %4, %7 : vector<1x128xi32>
    %c0_i32_2 = arith.constant 0 : i32
    %9 = arith.cmpi slt, %2, %c0_i32_2 : i32
    %10 = vector.broadcast %9 : i1 to vector<1x128xi1>
    %11 = vector.broadcast %10 : vector<1x128xi1> to vector<1x128xi1>
    %12 = arith.xori %8, %11 : vector<1x128xi1>
    %13 = arith.andi %12, %6 : vector<1x128xi1>
    %14 = vector.broadcast %2 : i32 to vector<1x128xi32>
    %15 = arith.addi %4, %14 : vector<1x128xi32>
    %16 = arith.select %13, %15, %4 : vector<1x128xi1>, vector<1x128xi32>
    %c0 = arith.constant 0 : index
    %c0_3 = arith.constant 0 : index
    %17 = vector.load %arg1[%c0, %c0_3] : memref<8x128xf32, #tpu.memory_space<vmem>>, vector<8x128xf32>
    %c0_4 = arith.constant 0 : index
    %c0_5 = arith.constant 0 : index
    %18 = vector.load %arg2[%c0_4, %c0_5] : memref<8x128xf32, #tpu.memory_space<vmem>>, vector<8x128xf32>
    %cst = arith.constant 0.000000e+00 : f32
    %19 = vector.broadcast %cst : f32 to vector<8x128xf32>
    %20 = arith.maximumf %17, %19 : vector<8x128xf32>
    %cst_6 = arith.constant 0.000000e+00 : f32
    %21 = vector.broadcast %cst_6 : f32 to vector<8x128xf32>
    %22 = arith.maximumf %18, %21 : vector<8x128xf32>
    %c0_7 = arith.constant 0 : index
    %c0_8 = arith.constant 0 : index
    %23 = vector.load %arg3[%c0_7, %c0_8] : memref<120x8xf32, #tpu.memory_space<vmem>>, vector<8x8xf32>
    %24 = arith.truncf %23 : vector<8x8xf32> to vector<8x8xbf16>
    %25 = arith.truncf %20 : vector<8x128xf32> to vector<8x128xbf16>
    %cst_9 = arith.constant dense<0.000000e+00> : vector<8x128xf32>
    %26 = tpu.matmul %24, %25, %cst_9 {dimension_numbers = #tpu.dot_dimension_numbers<[1], [0], [0], [1], [0, 0, 1, 1], [], []>} : vector<8x8xbf16>, vector<8x128xbf16>, vector<8x128xf32> -> vector<8x128xf32>
    %c0_10 = arith.constant 0 : index
    %c0_11 = arith.constant 0 : index
    %27 = vector.load %arg5[%c0_10, %c0_11] : memref<8x15xf32, #tpu.memory_space<vmem>>, vector<8x1xf32>
    %28 = vector.broadcast %27 : vector<8x1xf32> to vector<8x128xf32>
    %29 = arith.addf %26, %28 : vector<8x128xf32>
    %c0_12 = arith.constant 0 : index
    %c0_13 = arith.constant 0 : index
    %30 = vector.load %arg3[%c0_12, %c0_13] : memref<120x8xf32, #tpu.memory_space<vmem>>, vector<8x8xf32>
    %31 = arith.truncf %30 : vector<8x8xf32> to vector<8x8xbf16>
    %32 = arith.truncf %22 : vector<8x128xf32> to vector<8x128xbf16>
    %cst_14 = arith.constant dense<0.000000e+00> : vector<8x128xf32>
    %33 = tpu.matmul %31, %32, %cst_14 {dimension_numbers = #tpu.dot_dimension_numbers<[1], [0], [0], [1], [0, 0, 1, 1], [], []>} : vector<8x8xbf16>, vector<8x128xbf16>, vector<8x128xf32> -> vector<8x128xf32>
    %c0_15 = arith.constant 0 : index
    %c0_16 = arith.constant 0 : index
    %34 = vector.load %arg5[%c0_15, %c0_16] : memref<8x15xf32, #tpu.memory_space<vmem>>, vector<8x1xf32>
    %35 = vector.broadcast %34 : vector<8x1xf32> to vector<8x128xf32>
    %36 = arith.addf %33, %35 : vector<8x128xf32>
    %cst_17 = arith.constant 0.000000e+00 : f32
    %37 = vector.broadcast %cst_17 : f32 to vector<8x128xf32>
    %38 = arith.maximumf %29, %37 : vector<8x128xf32>
    %cst_18 = arith.constant 0.000000e+00 : f32
    %39 = vector.broadcast %cst_18 : f32 to vector<8x128xf32>
    %40 = arith.maximumf %36, %39 : vector<8x128xf32>
    %41 = arith.maximumf %17, %18 : vector<8x128xf32>
    %c-1_i32 = arith.constant -1 : i32
    %42 = vector.broadcast %c-1_i32 : i32 to vector<1x128xi32>
    %43 = arith.addi %16, %42 : vector<1x128xi32>
    %c0_i32_19 = arith.constant 0 : i32
    %44 = vector.broadcast %c0_i32_19 : i32 to vector<1x128xi32>
    %45 = arith.cmpi sge, %43, %44 : vector<1x128xi32>
    %c-1_i32_20 = arith.constant -1 : i32
    %46 = vector.broadcast %c-1_i32_20 : i32 to vector<1x128xi32>
    %47 = arith.addi %16, %46 : vector<1x128xi32>
    %c8_i32_21 = arith.constant 8 : i32
    %48 = vector.broadcast %c8_i32_21 : i32 to vector<1x128xi32>
    %49 = arith.cmpi slt, %47, %48 : vector<1x128xi32>
    %50 = arith.andi %45, %49 : vector<1x128xi1>
    %51 = vector.extract_strided_slice %18 {offsets = [0, 127], sizes = [8, 1], strides = [1, 1]} : vector<8x128xf32> to vector<8x1xf32>
    %52 = vector.extract_strided_slice %18 {offsets = [0, 0], sizes = [8, 127], strides = [1, 1]} : vector<8x128xf32> to vector<8x127xf32>
    %53 = tpu.concatenate %51, %52 in 1 : vector<8x1xf32>, vector<8x127xf32> -> vector<8x128xf32>
    %cst_22 = arith.constant -1.000000e+30 : f32
    %54 = vector.shape_cast %50 : vector<1x128xi1> to vector<1x128xi1>
    %55 = vector.broadcast %54 : vector<1x128xi1> to vector<8x128xi1>
    %56 = vector.broadcast %cst_22 : f32 to vector<8x128xf32>
    %57 = arith.select %55, %53, %56 : vector<8x128xi1>, vector<8x128xf32>
    %58 = arith.maximumf %41, %57 : vector<8x128xf32>
    %59 = arith.maximumf %29, %36 : vector<8x128xf32>
    %60 = vector.extract_strided_slice %36 {offsets = [0, 127], sizes = [8, 1], strides = [1, 1]} : vector<8x128xf32> to vector<8x1xf32>
    %61 = vector.extract_strided_slice %36 {offsets = [0, 0], sizes = [8, 127], strides = [1, 1]} : vector<8x128xf32> to vector<8x127xf32>
    %62 = tpu.concatenate %60, %61 in 1 : vector<8x1xf32>, vector<8x127xf32> -> vector<8x128xf32>
    %cst_23 = arith.constant -1.000000e+30 : f32
    %63 = vector.shape_cast %50 : vector<1x128xi1> to vector<1x128xi1>
    %64 = vector.broadcast %63 : vector<1x128xi1> to vector<8x128xi1>
    %65 = vector.broadcast %cst_23 : f32 to vector<8x128xf32>
    %66 = arith.select %64, %62, %65 : vector<8x128xi1>, vector<8x128xf32>
    %67 = arith.maximumf %59, %66 : vector<8x128xf32>
    %c0_24 = arith.constant 0 : index
    %c0_25 = arith.constant 0 : index
    %68 = vector.load %arg4[%c0_24, %c0_25] : memref<96x8xf32, #tpu.memory_space<vmem>>, vector<8x8xf32>
    %69 = vector.extract_strided_slice %68 {offsets = [0, 0], sizes = [8, 1], strides = [1, 1]} : vector<8x8xf32> to vector<8x1xf32>
    %70 = vector.extract_strided_slice %20 {offsets = [0, 127], sizes = [8, 1], strides = [1, 1]} : vector<8x128xf32> to vector<8x1xf32>
    %71 = vector.extract_strided_slice %20 {offsets = [0, 0], sizes = [8, 127], strides = [1, 1]} : vector<8x128xf32> to vector<8x127xf32>
    %72 = tpu.concatenate %70, %71 in 1 : vector<8x1xf32>, vector<8x127xf32> -> vector<8x128xf32>
    %cst_26 = arith.constant 0.000000e+00 : f32
    %73 = vector.shape_cast %50 : vector<1x128xi1> to vector<1x128xi1>
    %74 = vector.broadcast %73 : vector<1x128xi1> to vector<8x128xi1>
    %75 = vector.broadcast %cst_26 : f32 to vector<8x128xf32>
    %76 = arith.select %74, %72, %75 : vector<8x128xi1>, vector<8x128xf32>
    %77 = vector.broadcast %69 : vector<8x1xf32> to vector<8x128xf32>
    %78 = arith.mulf %77, %76 : vector<8x128xf32>
    %79 = vector.extract_strided_slice %68 {offsets = [0, 1], sizes = [8, 1], strides = [1, 1]} : vector<8x8xf32> to vector<8x1xf32>
    %80 = vector.extract_strided_slice %22 {offsets = [0, 127], sizes = [8, 1], strides = [1, 1]} : vector<8x128xf32> to vector<8x1xf32>
    %81 = vector.extract_strided_slice %22 {offsets = [0, 0], sizes = [8, 127], strides = [1, 1]} : vector<8x128xf32> to vector<8x127xf32>
    %82 = tpu.concatenate %80, %81 in 1 : vector<8x1xf32>, vector<8x127xf32> -> vector<8x128xf32>
    %cst_27 = arith.constant 0.000000e+00 : f32
    %83 = vector.shape_cast %50 : vector<1x128xi1> to vector<1x128xi1>
    %84 = vector.broadcast %83 : vector<1x128xi1> to vector<8x128xi1>
    %85 = vector.broadcast %cst_27 : f32 to vector<8x128xf32>
    %86 = arith.select %84, %82, %85 : vector<8x128xi1>, vector<8x128xf32>
    %87 = vector.broadcast %79 : vector<8x1xf32> to vector<8x128xf32>
    %88 = arith.mulf %87, %86 : vector<8x128xf32>
    %89 = vector.extract_strided_slice %68 {offsets = [0, 2], sizes = [8, 1], strides = [1, 1]} : vector<8x8xf32> to vector<8x1xf32>
    %90 = vector.broadcast %89 : vector<8x1xf32> to vector<8x128xf32>
    %91 = arith.mulf %90, %20 : vector<8x128xf32>
    %92 = vector.extract_strided_slice %68 {offsets = [0, 3], sizes = [8, 1], strides = [1, 1]} : vector<8x8xf32> to vector<8x1xf32>
    %93 = vector.broadcast %92 : vector<8x1xf32> to vector<8x128xf32>
    %94 = arith.mulf %93, %22 : vector<8x128xf32>
    %95 = vector.extract_strided_slice %68 {offsets = [0, 4], sizes = [8, 1], strides = [1, 1]} : vector<8x8xf32> to vector<8x1xf32>
    %c1_i32_28 = arith.constant 1 : i32
    %96 = vector.broadcast %c1_i32_28 : i32 to vector<1x128xi32>
    %97 = arith.addi %16, %96 : vector<1x128xi32>
    %c0_i32_29 = arith.constant 0 : i32
    %98 = vector.broadcast %c0_i32_29 : i32 to vector<1x128xi32>
    %99 = arith.cmpi sge, %97, %98 : vector<1x128xi32>
    %c1_i32_30 = arith.constant 1 : i32
    %100 = vector.broadcast %c1_i32_30 : i32 to vector<1x128xi32>
    %101 = arith.addi %16, %100 : vector<1x128xi32>
    %c8_i32_31 = arith.constant 8 : i32
    %102 = vector.broadcast %c8_i32_31 : i32 to vector<1x128xi32>
    %103 = arith.cmpi slt, %101, %102 : vector<1x128xi32>
    %104 = arith.andi %99, %103 : vector<1x128xi1>
    %105 = vector.extract_strided_slice %20 {offsets = [0, 1], sizes = [8, 127], strides = [1, 1]} : vector<8x128xf32> to vector<8x127xf32>
    %106 = vector.extract_strided_slice %20 {offsets = [0, 0], sizes = [8, 1], strides = [1, 1]} : vector<8x128xf32> to vector<8x1xf32>
    %107 = tpu.concatenate %105, %106 in 1 : vector<8x127xf32>, vector<8x1xf32> -> vector<8x128xf32>
    %cst_32 = arith.constant 0.000000e+00 : f32
    %108 = vector.shape_cast %104 : vector<1x128xi1> to vector<1x128xi1>
    %109 = vector.broadcast %108 : vector<1x128xi1> to vector<8x128xi1>
    %110 = vector.broadcast %cst_32 : f32 to vector<8x128xf32>
    %111 = arith.select %109, %107, %110 : vector<8x128xi1>, vector<8x128xf32>
    %112 = vector.broadcast %95 : vector<8x1xf32> to vector<8x128xf32>
    %113 = arith.mulf %112, %111 : vector<8x128xf32>
    %114 = arith.addf %78, %88 : vector<8x128xf32>
    %115 = arith.addf %91, %94 : vector<8x128xf32>
    %116 = arith.addf %114, %115 : vector<8x128xf32>
    %117 = arith.addf %116, %113 : vector<8x128xf32>
    %c24 = arith.constant 24 : index
    %c0_33 = arith.constant 0 : index
    %118 = vector.load %arg3[%c24, %c0_33] : memref<120x8xf32, #tpu.memory_space<vmem>>, vector<8x8xf32>
    %119 = arith.truncf %118 : vector<8x8xf32> to vector<8x8xbf16>
    %120 = arith.truncf %117 : vector<8x128xf32> to vector<8x128xbf16>
    %cst_34 = arith.constant dense<0.000000e+00> : vector<8x128xf32>
    %121 = tpu.matmul %119, %120, %cst_34 {dimension_numbers = #tpu.dot_dimension_numbers<[1], [0], [0], [1], [0, 0, 1, 1], [], []>} : vector<8x8xbf16>, vector<8x128xbf16>, vector<8x128xf32> -> vector<8x128xf32>
    %c0_35 = arith.constant 0 : index
    %c3 = arith.constant 3 : index
    %122 = vector.load %arg5[%c0_35, %c3] : memref<8x15xf32, #tpu.memory_space<vmem>>, vector<8x1xf32>
    %123 = vector.broadcast %122 : vector<8x1xf32> to vector<8x128xf32>
    %124 = arith.addf %121, %123 : vector<8x128xf32>
    %cst_36 = arith.constant 0.000000e+00 : f32
    %125 = vector.broadcast %cst_36 : f32 to vector<8x128xf32>
    %126 = arith.maximumf %124, %125 : vector<8x128xf32>
    %c8 = arith.constant 8 : index
    %c0_37 = arith.constant 0 : index
    %127 = vector.load %arg4[%c8, %c0_37] : memref<96x8xf32, #tpu.memory_space<vmem>>, vector<8x8xf32>
    %128 = vector.extract_strided_slice %127 {offsets = [0, 0], sizes = [8, 1], strides = [1, 1]} : vector<8x8xf32> to vector<8x1xf32>
    %c-2_i32 = arith.constant -2 : i32
    %129 = vector.broadcast %c-2_i32 : i32 to vector<1x128xi32>
    %130 = arith.addi %16, %129 : vector<1x128xi32>
    %c0_i32_38 = arith.constant 0 : i32
    %131 = vector.broadcast %c0_i32_38 : i32 to vector<1x128xi32>
    %132 = arith.cmpi sge, %130, %131 : vector<1x128xi32>
    %c-2_i32_39 = arith.constant -2 : i32
    %133 = vector.broadcast %c-2_i32_39 : i32 to vector<1x128xi32>
    %134 = arith.addi %16, %133 : vector<1x128xi32>
    %c8_i32_40 = arith.constant 8 : i32
    %135 = vector.broadcast %c8_i32_40 : i32 to vector<1x128xi32>
    %136 = arith.cmpi slt, %134, %135 : vector<1x128xi32>
    %137 = arith.andi %132, %136 : vector<1x128xi1>
    %138 = vector.extract_strided_slice %126 {offsets = [0, 126], sizes = [8, 2], strides = [1, 1]} : vector<8x128xf32> to vector<8x2xf32>
    %139 = vector.extract_strided_slice %126 {offsets = [0, 0], sizes = [8, 126], strides = [1, 1]} : vector<8x128xf32> to vector<8x126xf32>
    %140 = tpu.concatenate %138, %139 in 1 : vector<8x2xf32>, vector<8x126xf32> -> vector<8x128xf32>
    %cst_41 = arith.constant 0.000000e+00 : f32
    %141 = vector.shape_cast %137 : vector<1x128xi1> to vector<1x128xi1>
    %142 = vector.broadcast %141 : vector<1x128xi1> to vector<8x128xi1>
    %143 = vector.broadcast %cst_41 : f32 to vector<8x128xf32>
    %144 = arith.select %142, %140, %143 : vector<8x128xi1>, vector<8x128xf32>
    %145 = vector.broadcast %128 : vector<8x1xf32> to vector<8x128xf32>
    %146 = arith.mulf %145, %144 : vector<8x128xf32>
    %147 = vector.extract_strided_slice %127 {offsets = [0, 1], sizes = [8, 1], strides = [1, 1]} : vector<8x8xf32> to vector<8x1xf32>
    %148 = vector.extract_strided_slice %126 {offsets = [0, 127], sizes = [8, 1], strides = [1, 1]} : vector<8x128xf32> to vector<8x1xf32>
    %149 = vector.extract_strided_slice %126 {offsets = [0, 0], sizes = [8, 127], strides = [1, 1]} : vector<8x128xf32> to vector<8x127xf32>
    %150 = tpu.concatenate %148, %149 in 1 : vector<8x1xf32>, vector<8x127xf32> -> vector<8x128xf32>
    %cst_42 = arith.constant 0.000000e+00 : f32
    %151 = vector.shape_cast %50 : vector<1x128xi1> to vector<1x128xi1>
    %152 = vector.broadcast %151 : vector<1x128xi1> to vector<8x128xi1>
    %153 = vector.broadcast %cst_42 : f32 to vector<8x128xf32>
    %154 = arith.select %152, %150, %153 : vector<8x128xi1>, vector<8x128xf32>
    %155 = vector.broadcast %147 : vector<8x1xf32> to vector<8x128xf32>
    %156 = arith.mulf %155, %154 : vector<8x128xf32>
    %157 = vector.extract_strided_slice %127 {offsets = [0, 2], sizes = [8, 1], strides = [1, 1]} : vector<8x8xf32> to vector<8x1xf32>
    %158 = vector.broadcast %157 : vector<8x1xf32> to vector<8x128xf32>
    %159 = arith.mulf %158, %126 : vector<8x128xf32>
    %160 = vector.extract_strided_slice %127 {offsets = [0, 3], sizes = [8, 1], strides = [1, 1]} : vector<8x8xf32> to vector<8x1xf32>
    %161 = vector.extract_strided_slice %126 {offsets = [0, 1], sizes = [8, 127], strides = [1, 1]} : vector<8x128xf32> to vector<8x127xf32>
    %162 = vector.extract_strided_slice %126 {offsets = [0, 0], sizes = [8, 1], strides = [1, 1]} : vector<8x128xf32> to vector<8x1xf32>
    %163 = tpu.concatenate %161, %162 in 1 : vector<8x127xf32>, vector<8x1xf32> -> vector<8x128xf32>
    %cst_43 = arith.constant 0.000000e+00 : f32
    %164 = vector.shape_cast %104 : vector<1x128xi1> to vector<1x128xi1>
    %165 = vector.broadcast %164 : vector<1x128xi1> to vector<8x128xi1>
    %166 = vector.broadcast %cst_43 : f32 to vector<8x128xf32>
    %167 = arith.select %165, %163, %166 : vector<8x128xi1>, vector<8x128xf32>
    %168 = vector.broadcast %160 : vector<8x1xf32> to vector<8x128xf32>
    %169 = arith.mulf %168, %167 : vector<8x128xf32>
    %170 = vector.extract_strided_slice %127 {offsets = [0, 4], sizes = [8, 1], strides = [1, 1]} : vector<8x8xf32> to vector<8x1xf32>
    %c2_i32 = arith.constant 2 : i32
    %171 = vector.broadcast %c2_i32 : i32 to vector<1x128xi32>
    %172 = arith.addi %16, %171 : vector<1x128xi32>
    %c0_i32_44 = arith.constant 0 : i32
    %173 = vector.broadcast %c0_i32_44 : i32 to vector<1x128xi32>
    %174 = arith.cmpi sge, %172, %173 : vector<1x128xi32>
    %c2_i32_45 = arith.constant 2 : i32
    %175 = vector.broadcast %c2_i32_45 : i32 to vector<1x128xi32>
    %176 = arith.addi %16, %175 : vector<1x128xi32>
    %c8_i32_46 = arith.constant 8 : i32
    %177 = vector.broadcast %c8_i32_46 : i32 to vector<1x128xi32>
    %178 = arith.cmpi slt, %176, %177 : vector<1x128xi32>
    %179 = arith.andi %174, %178 : vector<1x128xi1>
    %180 = vector.extract_strided_slice %126 {offsets = [0, 2], sizes = [8, 126], strides = [1, 1]} : vector<8x128xf32> to vector<8x126xf32>
    %181 = vector.extract_strided_slice %126 {offsets = [0, 0], sizes = [8, 2], strides = [1, 1]} : vector<8x128xf32> to vector<8x2xf32>
    %182 = tpu.concatenate %180, %181 in 1 : vector<8x126xf32>, vector<8x2xf32> -> vector<8x128xf32>
    %cst_47 = arith.constant 0.000000e+00 : f32
    %183 = vector.shape_cast %179 : vector<1x128xi1> to vector<1x128xi1>
    %184 = vector.broadcast %183 : vector<1x128xi1> to vector<8x128xi1>
    %185 = vector.broadcast %cst_47 : f32 to vector<8x128xf32>
    %186 = arith.select %184, %182, %185 : vector<8x128xi1>, vector<8x128xf32>
    %187 = vector.broadcast %170 : vector<8x1xf32> to vector<8x128xf32>
    %188 = arith.mulf %187, %186 : vector<8x128xf32>
    %189 = arith.addf %146, %156 : vector<8x128xf32>
    %190 = arith.addf %159, %169 : vector<8x128xf32>
    %191 = arith.addf %189, %190 : vector<8x128xf32>
    %192 = arith.addf %191, %188 : vector<8x128xf32>
    %c32 = arith.constant 32 : index
    %c0_48 = arith.constant 0 : index
    %193 = vector.load %arg3[%c32, %c0_48] : memref<120x8xf32, #tpu.memory_space<vmem>>, vector<8x8xf32>
    %194 = arith.truncf %193 : vector<8x8xf32> to vector<8x8xbf16>
    %195 = arith.truncf %192 : vector<8x128xf32> to vector<8x128xbf16>
    %cst_49 = arith.constant dense<0.000000e+00> : vector<8x128xf32>
    %196 = tpu.matmul %194, %195, %cst_49 {dimension_numbers = #tpu.dot_dimension_numbers<[1], [0], [0], [1], [0, 0, 1, 1], [], []>} : vector<8x8xbf16>, vector<8x128xbf16>, vector<8x128xf32> -> vector<8x128xf32>
    %c0_50 = arith.constant 0 : index
    %c4 = arith.constant 4 : index
    %197 = vector.load %arg5[%c0_50, %c4] : memref<8x15xf32, #tpu.memory_space<vmem>>, vector<8x1xf32>
    %198 = vector.broadcast %197 : vector<8x1xf32> to vector<8x128xf32>
    %199 = arith.addf %196, %198 : vector<8x128xf32>
    %c8_51 = arith.constant 8 : index
    %c0_52 = arith.constant 0 : index
    %200 = vector.load %arg3[%c8_51, %c0_52] : memref<120x8xf32, #tpu.memory_space<vmem>>, vector<8x8xf32>
    %201 = arith.truncf %200 : vector<8x8xf32> to vector<8x8xbf16>
    %202 = arith.truncf %58 : vector<8x128xf32> to vector<8x128xbf16>
    %cst_53 = arith.constant dense<0.000000e+00> : vector<8x128xf32>
    %203 = tpu.matmul %201, %202, %cst_53 {dimension_numbers = #tpu.dot_dimension_numbers<[1], [0], [0], [1], [0, 0, 1, 1], [], []>} : vector<8x8xbf16>, vector<8x128xbf16>, vector<8x128xf32> -> vector<8x128xf32>
    %c0_54 = arith.constant 0 : index
    %c1 = arith.constant 1 : index
    %204 = vector.load %arg5[%c0_54, %c1] : memref<8x15xf32, #tpu.memory_space<vmem>>, vector<8x1xf32>
    %205 = vector.broadcast %204 : vector<8x1xf32> to vector<8x128xf32>
    %206 = arith.addf %203, %205 : vector<8x128xf32>
    %207 = arith.addf %199, %206 : vector<8x128xf32>
    %c16 = arith.constant 16 : index
    %c0_55 = arith.constant 0 : index
    %208 = vector.load %arg4[%c16, %c0_55] : memref<96x8xf32, #tpu.memory_space<vmem>>, vector<8x8xf32>
    %209 = vector.extract_strided_slice %208 {offsets = [0, 0], sizes = [8, 1], strides = [1, 1]} : vector<8x8xf32> to vector<8x1xf32>
    %210 = vector.extract_strided_slice %40 {offsets = [0, 126], sizes = [8, 2], strides = [1, 1]} : vector<8x128xf32> to vector<8x2xf32>
    %211 = vector.extract_strided_slice %40 {offsets = [0, 0], sizes = [8, 126], strides = [1, 1]} : vector<8x128xf32> to vector<8x126xf32>
    %212 = tpu.concatenate %210, %211 in 1 : vector<8x2xf32>, vector<8x126xf32> -> vector<8x128xf32>
    %cst_56 = arith.constant 0.000000e+00 : f32
    %213 = vector.shape_cast %137 : vector<1x128xi1> to vector<1x128xi1>
    %214 = vector.broadcast %213 : vector<1x128xi1> to vector<8x128xi1>
    %215 = vector.broadcast %cst_56 : f32 to vector<8x128xf32>
    %216 = arith.select %214, %212, %215 : vector<8x128xi1>, vector<8x128xf32>
    %217 = vector.broadcast %209 : vector<8x1xf32> to vector<8x128xf32>
    %218 = arith.mulf %217, %216 : vector<8x128xf32>
    %219 = vector.extract_strided_slice %208 {offsets = [0, 1], sizes = [8, 1], strides = [1, 1]} : vector<8x8xf32> to vector<8x1xf32>
    %220 = vector.extract_strided_slice %38 {offsets = [0, 127], sizes = [8, 1], strides = [1, 1]} : vector<8x128xf32> to vector<8x1xf32>
    %221 = vector.extract_strided_slice %38 {offsets = [0, 0], sizes = [8, 127], strides = [1, 1]} : vector<8x128xf32> to vector<8x127xf32>
    %222 = tpu.concatenate %220, %221 in 1 : vector<8x1xf32>, vector<8x127xf32> -> vector<8x128xf32>
    %cst_57 = arith.constant 0.000000e+00 : f32
    %223 = vector.shape_cast %50 : vector<1x128xi1> to vector<1x128xi1>
    %224 = vector.broadcast %223 : vector<1x128xi1> to vector<8x128xi1>
    %225 = vector.broadcast %cst_57 : f32 to vector<8x128xf32>
    %226 = arith.select %224, %222, %225 : vector<8x128xi1>, vector<8x128xf32>
    %227 = vector.broadcast %219 : vector<8x1xf32> to vector<8x128xf32>
    %228 = arith.mulf %227, %226 : vector<8x128xf32>
    %229 = vector.extract_strided_slice %208 {offsets = [0, 2], sizes = [8, 1], strides = [1, 1]} : vector<8x8xf32> to vector<8x1xf32>
    %230 = vector.extract_strided_slice %40 {offsets = [0, 127], sizes = [8, 1], strides = [1, 1]} : vector<8x128xf32> to vector<8x1xf32>
    %231 = vector.extract_strided_slice %40 {offsets = [0, 0], sizes = [8, 127], strides = [1, 1]} : vector<8x128xf32> to vector<8x127xf32>
    %232 = tpu.concatenate %230, %231 in 1 : vector<8x1xf32>, vector<8x127xf32> -> vector<8x128xf32>
    %cst_58 = arith.constant 0.000000e+00 : f32
    %233 = vector.shape_cast %50 : vector<1x128xi1> to vector<1x128xi1>
    %234 = vector.broadcast %233 : vector<1x128xi1> to vector<8x128xi1>
    %235 = vector.broadcast %cst_58 : f32 to vector<8x128xf32>
    %236 = arith.select %234, %232, %235 : vector<8x128xi1>, vector<8x128xf32>
    %237 = vector.broadcast %229 : vector<8x1xf32> to vector<8x128xf32>
    %238 = arith.mulf %237, %236 : vector<8x128xf32>
    %239 = vector.extract_strided_slice %208 {offsets = [0, 3], sizes = [8, 1], strides = [1, 1]} : vector<8x8xf32> to vector<8x1xf32>
    %240 = vector.broadcast %239 : vector<8x1xf32> to vector<8x128xf32>
    %241 = arith.mulf %240, %38 : vector<8x128xf32>
    %242 = vector.extract_strided_slice %208 {offsets = [0, 4], sizes = [8, 1], strides = [1, 1]} : vector<8x8xf32> to vector<8x1xf32>
    %243 = vector.broadcast %242 : vector<8x1xf32> to vector<8x128xf32>
    %244 = arith.mulf %243, %40 : vector<8x128xf32>
    %245 = vector.extract_strided_slice %208 {offsets = [0, 5], sizes = [8, 1], strides = [1, 1]} : vector<8x8xf32> to vector<8x1xf32>
    %246 = vector.extract_strided_slice %38 {offsets = [0, 1], sizes = [8, 127], strides = [1, 1]} : vector<8x128xf32> to vector<8x127xf32>
    %247 = vector.extract_strided_slice %38 {offsets = [0, 0], sizes = [8, 1], strides = [1, 1]} : vector<8x128xf32> to vector<8x1xf32>
    %248 = tpu.concatenate %246, %247 in 1 : vector<8x127xf32>, vector<8x1xf32> -> vector<8x128xf32>
    %cst_59 = arith.constant 0.000000e+00 : f32
    %249 = vector.shape_cast %104 : vector<1x128xi1> to vector<1x128xi1>
    %250 = vector.broadcast %249 : vector<1x128xi1> to vector<8x128xi1>
    %251 = vector.broadcast %cst_59 : f32 to vector<8x128xf32>
    %252 = arith.select %250, %248, %251 : vector<8x128xi1>, vector<8x128xf32>
    %253 = vector.broadcast %245 : vector<8x1xf32> to vector<8x128xf32>
    %254 = arith.mulf %253, %252 : vector<8x128xf32>
    %255 = vector.extract_strided_slice %208 {offsets = [0, 6], sizes = [8, 1], strides = [1, 1]} : vector<8x8xf32> to vector<8x1xf32>
    %256 = vector.extract_strided_slice %40 {offsets = [0, 1], sizes = [8, 127], strides = [1, 1]} : vector<8x128xf32> to vector<8x127xf32>
    %257 = vector.extract_strided_slice %40 {offsets = [0, 0], sizes = [8, 1], strides = [1, 1]} : vector<8x128xf32> to vector<8x1xf32>
    %258 = tpu.concatenate %256, %257 in 1 : vector<8x127xf32>, vector<8x1xf32> -> vector<8x128xf32>
    %cst_60 = arith.constant 0.000000e+00 : f32
    %259 = vector.shape_cast %104 : vector<1x128xi1> to vector<1x128xi1>
    %260 = vector.broadcast %259 : vector<1x128xi1> to vector<8x128xi1>
    %261 = vector.broadcast %cst_60 : f32 to vector<8x128xf32>
    %262 = arith.select %260, %258, %261 : vector<8x128xi1>, vector<8x128xf32>
    %263 = vector.broadcast %255 : vector<8x1xf32> to vector<8x128xf32>
    %264 = arith.mulf %263, %262 : vector<8x128xf32>
    %265 = arith.addf %218, %228 : vector<8x128xf32>
    %266 = arith.addf %238, %241 : vector<8x128xf32>
    %267 = arith.addf %244, %254 : vector<8x128xf32>
    %268 = arith.addf %265, %266 : vector<8x128xf32>
    %269 = arith.addf %267, %264 : vector<8x128xf32>
    %270 = arith.addf %268, %269 : vector<8x128xf32>
    %c40 = arith.constant 40 : index
    %c0_61 = arith.constant 0 : index
    %271 = vector.load %arg3[%c40, %c0_61] : memref<120x8xf32, #tpu.memory_space<vmem>>, vector<8x8xf32>
    %272 = arith.truncf %271 : vector<8x8xf32> to vector<8x8xbf16>
    %273 = arith.truncf %270 : vector<8x128xf32> to vector<8x128xbf16>
    %cst_62 = arith.constant dense<0.000000e+00> : vector<8x128xf32>
    %274 = tpu.matmul %272, %273, %cst_62 {dimension_numbers = #tpu.dot_dimension_numbers<[1], [0], [0], [1], [0, 0, 1, 1], [], []>} : vector<8x8xbf16>, vector<8x128xbf16>, vector<8x128xf32> -> vector<8x128xf32>
    %c0_63 = arith.constant 0 : index
    %c5 = arith.constant 5 : index
    %275 = vector.load %arg5[%c0_63, %c5] : memref<8x15xf32, #tpu.memory_space<vmem>>, vector<8x1xf32>
    %276 = vector.broadcast %275 : vector<8x1xf32> to vector<8x128xf32>
    %277 = arith.addf %274, %276 : vector<8x128xf32>
    %cst_64 = arith.constant 0.000000e+00 : f32
    %278 = vector.broadcast %cst_64 : f32 to vector<8x128xf32>
    %279 = arith.maximumf %277, %278 : vector<8x128xf32>
    %c24_65 = arith.constant 24 : index
    %c0_66 = arith.constant 0 : index
    %280 = vector.load %arg4[%c24_65, %c0_66] : memref<96x8xf32, #tpu.memory_space<vmem>>, vector<8x8xf32>
    %281 = vector.extract_strided_slice %280 {offsets = [0, 0], sizes = [8, 1], strides = [1, 1]} : vector<8x8xf32> to vector<8x1xf32>
    %c-3_i32 = arith.constant -3 : i32
    %282 = vector.broadcast %c-3_i32 : i32 to vector<1x128xi32>
    %283 = arith.addi %16, %282 : vector<1x128xi32>
    %c0_i32_67 = arith.constant 0 : i32
    %284 = vector.broadcast %c0_i32_67 : i32 to vector<1x128xi32>
    %285 = arith.cmpi sge, %283, %284 : vector<1x128xi32>
    %c-3_i32_68 = arith.constant -3 : i32
    %286 = vector.broadcast %c-3_i32_68 : i32 to vector<1x128xi32>
    %287 = arith.addi %16, %286 : vector<1x128xi32>
    %c8_i32_69 = arith.constant 8 : i32
    %288 = vector.broadcast %c8_i32_69 : i32 to vector<1x128xi32>
    %289 = arith.cmpi slt, %287, %288 : vector<1x128xi32>
    %290 = arith.andi %285, %289 : vector<1x128xi1>
    %291 = vector.extract_strided_slice %279 {offsets = [0, 125], sizes = [8, 3], strides = [1, 1]} : vector<8x128xf32> to vector<8x3xf32>
    %292 = vector.extract_strided_slice %279 {offsets = [0, 0], sizes = [8, 125], strides = [1, 1]} : vector<8x128xf32> to vector<8x125xf32>
    %293 = tpu.concatenate %291, %292 in 1 : vector<8x3xf32>, vector<8x125xf32> -> vector<8x128xf32>
    %cst_70 = arith.constant 0.000000e+00 : f32
    %294 = vector.shape_cast %290 : vector<1x128xi1> to vector<1x128xi1>
    %295 = vector.broadcast %294 : vector<1x128xi1> to vector<8x128xi1>
    %296 = vector.broadcast %cst_70 : f32 to vector<8x128xf32>
    %297 = arith.select %295, %293, %296 : vector<8x128xi1>, vector<8x128xf32>
    %298 = vector.broadcast %281 : vector<8x1xf32> to vector<8x128xf32>
    %299 = arith.mulf %298, %297 : vector<8x128xf32>
    %300 = vector.extract_strided_slice %280 {offsets = [0, 1], sizes = [8, 1], strides = [1, 1]} : vector<8x8xf32> to vector<8x1xf32>
    %301 = vector.extract_strided_slice %279 {offsets = [0, 126], sizes = [8, 2], strides = [1, 1]} : vector<8x128xf32> to vector<8x2xf32>
    %302 = vector.extract_strided_slice %279 {offsets = [0, 0], sizes = [8, 126], strides = [1, 1]} : vector<8x128xf32> to vector<8x126xf32>
    %303 = tpu.concatenate %301, %302 in 1 : vector<8x2xf32>, vector<8x126xf32> -> vector<8x128xf32>
    %cst_71 = arith.constant 0.000000e+00 : f32
    %304 = vector.shape_cast %137 : vector<1x128xi1> to vector<1x128xi1>
    %305 = vector.broadcast %304 : vector<1x128xi1> to vector<8x128xi1>
    %306 = vector.broadcast %cst_71 : f32 to vector<8x128xf32>
    %307 = arith.select %305, %303, %306 : vector<8x128xi1>, vector<8x128xf32>
    %308 = vector.broadcast %300 : vector<8x1xf32> to vector<8x128xf32>
    %309 = arith.mulf %308, %307 : vector<8x128xf32>
    %310 = vector.extract_strided_slice %280 {offsets = [0, 2], sizes = [8, 1], strides = [1, 1]} : vector<8x8xf32> to vector<8x1xf32>
    %311 = vector.extract_strided_slice %279 {offsets = [0, 127], sizes = [8, 1], strides = [1, 1]} : vector<8x128xf32> to vector<8x1xf32>
    %312 = vector.extract_strided_slice %279 {offsets = [0, 0], sizes = [8, 127], strides = [1, 1]} : vector<8x128xf32> to vector<8x127xf32>
    %313 = tpu.concatenate %311, %312 in 1 : vector<8x1xf32>, vector<8x127xf32> -> vector<8x128xf32>
    %cst_72 = arith.constant 0.000000e+00 : f32
    %314 = vector.shape_cast %50 : vector<1x128xi1> to vector<1x128xi1>
    %315 = vector.broadcast %314 : vector<1x128xi1> to vector<8x128xi1>
    %316 = vector.broadcast %cst_72 : f32 to vector<8x128xf32>
    %317 = arith.select %315, %313, %316 : vector<8x128xi1>, vector<8x128xf32>
    %318 = vector.broadcast %310 : vector<8x1xf32> to vector<8x128xf32>
    %319 = arith.mulf %318, %317 : vector<8x128xf32>
    %320 = vector.extract_strided_slice %280 {offsets = [0, 3], sizes = [8, 1], strides = [1, 1]} : vector<8x8xf32> to vector<8x1xf32>
    %321 = vector.broadcast %320 : vector<8x1xf32> to vector<8x128xf32>
    %322 = arith.mulf %321, %279 : vector<8x128xf32>
    %323 = vector.extract_strided_slice %280 {offsets = [0, 4], sizes = [8, 1], strides = [1, 1]} : vector<8x8xf32> to vector<8x1xf32>
    %324 = vector.extract_strided_slice %279 {offsets = [0, 1], sizes = [8, 127], strides = [1, 1]} : vector<8x128xf32> to vector<8x127xf32>
    %325 = vector.extract_strided_slice %279 {offsets = [0, 0], sizes = [8, 1], strides = [1, 1]} : vector<8x128xf32> to vector<8x1xf32>
    %326 = tpu.concatenate %324, %325 in 1 : vector<8x127xf32>, vector<8x1xf32> -> vector<8x128xf32>
    %cst_73 = arith.constant 0.000000e+00 : f32
    %327 = vector.shape_cast %104 : vector<1x128xi1> to vector<1x128xi1>
    %328 = vector.broadcast %327 : vector<1x128xi1> to vector<8x128xi1>
    %329 = vector.broadcast %cst_73 : f32 to vector<8x128xf32>
    %330 = arith.select %328, %326, %329 : vector<8x128xi1>, vector<8x128xf32>
    %331 = vector.broadcast %323 : vector<8x1xf32> to vector<8x128xf32>
    %332 = arith.mulf %331, %330 : vector<8x128xf32>
    %333 = vector.extract_strided_slice %280 {offsets = [0, 5], sizes = [8, 1], strides = [1, 1]} : vector<8x8xf32> to vector<8x1xf32>
    %334 = vector.extract_strided_slice %279 {offsets = [0, 2], sizes = [8, 126], strides = [1, 1]} : vector<8x128xf32> to vector<8x126xf32>
    %335 = vector.extract_strided_slice %279 {offsets = [0, 0], sizes = [8, 2], strides = [1, 1]} : vector<8x128xf32> to vector<8x2xf32>
    %336 = tpu.concatenate %334, %335 in 1 : vector<8x126xf32>, vector<8x2xf32> -> vector<8x128xf32>
    %cst_74 = arith.constant 0.000000e+00 : f32
    %337 = vector.shape_cast %179 : vector<1x128xi1> to vector<1x128xi1>
    %338 = vector.broadcast %337 : vector<1x128xi1> to vector<8x128xi1>
    %339 = vector.broadcast %cst_74 : f32 to vector<8x128xf32>
    %340 = arith.select %338, %336, %339 : vector<8x128xi1>, vector<8x128xf32>
    %341 = vector.broadcast %333 : vector<8x1xf32> to vector<8x128xf32>
    %342 = arith.mulf %341, %340 : vector<8x128xf32>
    %343 = vector.extract_strided_slice %280 {offsets = [0, 6], sizes = [8, 1], strides = [1, 1]} : vector<8x8xf32> to vector<8x1xf32>
    %c3_i32 = arith.constant 3 : i32
    %344 = vector.broadcast %c3_i32 : i32 to vector<1x128xi32>
    %345 = arith.addi %16, %344 : vector<1x128xi32>
    %c0_i32_75 = arith.constant 0 : i32
    %346 = vector.broadcast %c0_i32_75 : i32 to vector<1x128xi32>
    %347 = arith.cmpi sge, %345, %346 : vector<1x128xi32>
    %c3_i32_76 = arith.constant 3 : i32
    %348 = vector.broadcast %c3_i32_76 : i32 to vector<1x128xi32>
    %349 = arith.addi %16, %348 : vector<1x128xi32>
    %c8_i32_77 = arith.constant 8 : i32
    %350 = vector.broadcast %c8_i32_77 : i32 to vector<1x128xi32>
    %351 = arith.cmpi slt, %349, %350 : vector<1x128xi32>
    %352 = arith.andi %347, %351 : vector<1x128xi1>
    %353 = vector.extract_strided_slice %279 {offsets = [0, 3], sizes = [8, 125], strides = [1, 1]} : vector<8x128xf32> to vector<8x125xf32>
    %354 = vector.extract_strided_slice %279 {offsets = [0, 0], sizes = [8, 3], strides = [1, 1]} : vector<8x128xf32> to vector<8x3xf32>
    %355 = tpu.concatenate %353, %354 in 1 : vector<8x125xf32>, vector<8x3xf32> -> vector<8x128xf32>
    %cst_78 = arith.constant 0.000000e+00 : f32
    %356 = vector.shape_cast %352 : vector<1x128xi1> to vector<1x128xi1>
    %357 = vector.broadcast %356 : vector<1x128xi1> to vector<8x128xi1>
    %358 = vector.broadcast %cst_78 : f32 to vector<8x128xf32>
    %359 = arith.select %357, %355, %358 : vector<8x128xi1>, vector<8x128xf32>
    %360 = vector.broadcast %343 : vector<8x1xf32> to vector<8x128xf32>
    %361 = arith.mulf %360, %359 : vector<8x128xf32>
    %362 = arith.addf %299, %309 : vector<8x128xf32>
    %363 = arith.addf %319, %322 : vector<8x128xf32>
    %364 = arith.addf %332, %342 : vector<8x128xf32>
    %365 = arith.addf %362, %363 : vector<8x128xf32>
    %366 = arith.addf %364, %361 : vector<8x128xf32>
    %367 = arith.addf %365, %366 : vector<8x128xf32>
    %c48 = arith.constant 48 : index
    %c0_79 = arith.constant 0 : index
    %368 = vector.load %arg3[%c48, %c0_79] : memref<120x8xf32, #tpu.memory_space<vmem>>, vector<8x8xf32>
    %369 = arith.truncf %368 : vector<8x8xf32> to vector<8x8xbf16>
    %370 = arith.truncf %367 : vector<8x128xf32> to vector<8x128xbf16>
    %cst_80 = arith.constant dense<0.000000e+00> : vector<8x128xf32>
    %371 = tpu.matmul %369, %370, %cst_80 {dimension_numbers = #tpu.dot_dimension_numbers<[1], [0], [0], [1], [0, 0, 1, 1], [], []>} : vector<8x8xbf16>, vector<8x128xbf16>, vector<8x128xf32> -> vector<8x128xf32>
    %c0_81 = arith.constant 0 : index
    %c6 = arith.constant 6 : index
    %372 = vector.load %arg5[%c0_81, %c6] : memref<8x15xf32, #tpu.memory_space<vmem>>, vector<8x1xf32>
    %373 = vector.broadcast %372 : vector<8x1xf32> to vector<8x128xf32>
    %374 = arith.addf %371, %373 : vector<8x128xf32>
    %375 = arith.addf %374, %67 : vector<8x128xf32>
    %c32_82 = arith.constant 32 : index
    %c0_83 = arith.constant 0 : index
    %376 = vector.load %arg4[%c32_82, %c0_83] : memref<96x8xf32, #tpu.memory_space<vmem>>, vector<8x8xf32>
    %377 = vector.extract_strided_slice %376 {offsets = [0, 0], sizes = [8, 1], strides = [1, 1]} : vector<8x8xf32> to vector<8x1xf32>
    %378 = vector.extract_strided_slice %38 {offsets = [0, 127], sizes = [8, 1], strides = [1, 1]} : vector<8x128xf32> to vector<8x1xf32>
    %379 = vector.extract_strided_slice %38 {offsets = [0, 0], sizes = [8, 127], strides = [1, 1]} : vector<8x128xf32> to vector<8x127xf32>
    %380 = tpu.concatenate %378, %379 in 1 : vector<8x1xf32>, vector<8x127xf32> -> vector<8x128xf32>
    %cst_84 = arith.constant 0.000000e+00 : f32
    %381 = vector.shape_cast %50 : vector<1x128xi1> to vector<1x128xi1>
    %382 = vector.broadcast %381 : vector<1x128xi1> to vector<8x128xi1>
    %383 = vector.broadcast %cst_84 : f32 to vector<8x128xf32>
    %384 = arith.select %382, %380, %383 : vector<8x128xi1>, vector<8x128xf32>
    %385 = vector.broadcast %377 : vector<8x1xf32> to vector<8x128xf32>
    %386 = arith.mulf %385, %384 : vector<8x128xf32>
    %387 = vector.extract_strided_slice %376 {offsets = [0, 1], sizes = [8, 1], strides = [1, 1]} : vector<8x8xf32> to vector<8x1xf32>
    %388 = vector.extract_strided_slice %40 {offsets = [0, 127], sizes = [8, 1], strides = [1, 1]} : vector<8x128xf32> to vector<8x1xf32>
    %389 = vector.extract_strided_slice %40 {offsets = [0, 0], sizes = [8, 127], strides = [1, 1]} : vector<8x128xf32> to vector<8x127xf32>
    %390 = tpu.concatenate %388, %389 in 1 : vector<8x1xf32>, vector<8x127xf32> -> vector<8x128xf32>
    %cst_85 = arith.constant 0.000000e+00 : f32
    %391 = vector.shape_cast %50 : vector<1x128xi1> to vector<1x128xi1>
    %392 = vector.broadcast %391 : vector<1x128xi1> to vector<8x128xi1>
    %393 = vector.broadcast %cst_85 : f32 to vector<8x128xf32>
    %394 = arith.select %392, %390, %393 : vector<8x128xi1>, vector<8x128xf32>
    %395 = vector.broadcast %387 : vector<8x1xf32> to vector<8x128xf32>
    %396 = arith.mulf %395, %394 : vector<8x128xf32>
    %397 = vector.extract_strided_slice %376 {offsets = [0, 2], sizes = [8, 1], strides = [1, 1]} : vector<8x8xf32> to vector<8x1xf32>
    %398 = vector.broadcast %397 : vector<8x1xf32> to vector<8x128xf32>
    %399 = arith.mulf %398, %38 : vector<8x128xf32>
    %400 = vector.extract_strided_slice %376 {offsets = [0, 3], sizes = [8, 1], strides = [1, 1]} : vector<8x8xf32> to vector<8x1xf32>
    %401 = vector.broadcast %400 : vector<8x1xf32> to vector<8x128xf32>
    %402 = arith.mulf %401, %40 : vector<8x128xf32>
    %403 = vector.extract_strided_slice %376 {offsets = [0, 4], sizes = [8, 1], strides = [1, 1]} : vector<8x8xf32> to vector<8x1xf32>
    %404 = vector.extract_strided_slice %38 {offsets = [0, 1], sizes = [8, 127], strides = [1, 1]} : vector<8x128xf32> to vector<8x127xf32>
    %405 = vector.extract_strided_slice %38 {offsets = [0, 0], sizes = [8, 1], strides = [1, 1]} : vector<8x128xf32> to vector<8x1xf32>
    %406 = tpu.concatenate %404, %405 in 1 : vector<8x127xf32>, vector<8x1xf32> -> vector<8x128xf32>
    %cst_86 = arith.constant 0.000000e+00 : f32
    %407 = vector.shape_cast %104 : vector<1x128xi1> to vector<1x128xi1>
    %408 = vector.broadcast %407 : vector<1x128xi1> to vector<8x128xi1>
    %409 = vector.broadcast %cst_86 : f32 to vector<8x128xf32>
    %410 = arith.select %408, %406, %409 : vector<8x128xi1>, vector<8x128xf32>
    %411 = vector.broadcast %403 : vector<8x1xf32> to vector<8x128xf32>
    %412 = arith.mulf %411, %410 : vector<8x128xf32>
    %413 = arith.addf %386, %396 : vector<8x128xf32>
    %414 = arith.addf %399, %402 : vector<8x128xf32>
    %415 = arith.addf %413, %414 : vector<8x128xf32>
    %416 = arith.addf %415, %412 : vector<8x128xf32>
    %c56 = arith.constant 56 : index
    %c0_87 = arith.constant 0 : index
    %417 = vector.load %arg3[%c56, %c0_87] : memref<120x8xf32, #tpu.memory_space<vmem>>, vector<8x8xf32>
    %418 = arith.truncf %417 : vector<8x8xf32> to vector<8x8xbf16>
    %419 = arith.truncf %416 : vector<8x128xf32> to vector<8x128xbf16>
    %cst_88 = arith.constant dense<0.000000e+00> : vector<8x128xf32>
    %420 = tpu.matmul %418, %419, %cst_88 {dimension_numbers = #tpu.dot_dimension_numbers<[1], [0], [0], [1], [0, 0, 1, 1], [], []>} : vector<8x8xbf16>, vector<8x128xbf16>, vector<8x128xf32> -> vector<8x128xf32>
    %c0_89 = arith.constant 0 : index
    %c7 = arith.constant 7 : index
    %421 = vector.load %arg5[%c0_89, %c7] : memref<8x15xf32, #tpu.memory_space<vmem>>, vector<8x1xf32>
    %422 = vector.broadcast %421 : vector<8x1xf32> to vector<8x128xf32>
    %423 = arith.addf %420, %422 : vector<8x128xf32>
    %cst_90 = arith.constant 0.000000e+00 : f32
    %424 = vector.broadcast %cst_90 : f32 to vector<8x128xf32>
    %425 = arith.maximumf %423, %424 : vector<8x128xf32>
    %c40_91 = arith.constant 40 : index
    %c0_92 = arith.constant 0 : index
    %426 = vector.load %arg4[%c40_91, %c0_92] : memref<96x8xf32, #tpu.memory_space<vmem>>, vector<8x8xf32>
    %427 = vector.extract_strided_slice %426 {offsets = [0, 0], sizes = [8, 1], strides = [1, 1]} : vector<8x8xf32> to vector<8x1xf32>
    %428 = vector.extract_strided_slice %425 {offsets = [0, 126], sizes = [8, 2], strides = [1, 1]} : vector<8x128xf32> to vector<8x2xf32>
    %429 = vector.extract_strided_slice %425 {offsets = [0, 0], sizes = [8, 126], strides = [1, 1]} : vector<8x128xf32> to vector<8x126xf32>
    %430 = tpu.concatenate %428, %429 in 1 : vector<8x2xf32>, vector<8x126xf32> -> vector<8x128xf32>
    %cst_93 = arith.constant 0.000000e+00 : f32
    %431 = vector.shape_cast %137 : vector<1x128xi1> to vector<1x128xi1>
    %432 = vector.broadcast %431 : vector<1x128xi1> to vector<8x128xi1>
    %433 = vector.broadcast %cst_93 : f32 to vector<8x128xf32>
    %434 = arith.select %432, %430, %433 : vector<8x128xi1>, vector<8x128xf32>
    %435 = vector.broadcast %427 : vector<8x1xf32> to vector<8x128xf32>
    %436 = arith.mulf %435, %434 : vector<8x128xf32>
    %437 = vector.extract_strided_slice %426 {offsets = [0, 1], sizes = [8, 1], strides = [1, 1]} : vector<8x8xf32> to vector<8x1xf32>
    %438 = vector.extract_strided_slice %425 {offsets = [0, 127], sizes = [8, 1], strides = [1, 1]} : vector<8x128xf32> to vector<8x1xf32>
    %439 = vector.extract_strided_slice %425 {offsets = [0, 0], sizes = [8, 127], strides = [1, 1]} : vector<8x128xf32> to vector<8x127xf32>
    %440 = tpu.concatenate %438, %439 in 1 : vector<8x1xf32>, vector<8x127xf32> -> vector<8x128xf32>
    %cst_94 = arith.constant 0.000000e+00 : f32
    %441 = vector.shape_cast %50 : vector<1x128xi1> to vector<1x128xi1>
    %442 = vector.broadcast %441 : vector<1x128xi1> to vector<8x128xi1>
    %443 = vector.broadcast %cst_94 : f32 to vector<8x128xf32>
    %444 = arith.select %442, %440, %443 : vector<8x128xi1>, vector<8x128xf32>
    %445 = vector.broadcast %437 : vector<8x1xf32> to vector<8x128xf32>
    %446 = arith.mulf %445, %444 : vector<8x128xf32>
    %447 = vector.extract_strided_slice %426 {offsets = [0, 2], sizes = [8, 1], strides = [1, 1]} : vector<8x8xf32> to vector<8x1xf32>
    %448 = vector.broadcast %447 : vector<8x1xf32> to vector<8x128xf32>
    %449 = arith.mulf %448, %425 : vector<8x128xf32>
    %450 = vector.extract_strided_slice %426 {offsets = [0, 3], sizes = [8, 1], strides = [1, 1]} : vector<8x8xf32> to vector<8x1xf32>
    %451 = vector.extract_strided_slice %425 {offsets = [0, 1], sizes = [8, 127], strides = [1, 1]} : vector<8x128xf32> to vector<8x127xf32>
    %452 = vector.extract_strided_slice %425 {offsets = [0, 0], sizes = [8, 1], strides = [1, 1]} : vector<8x128xf32> to vector<8x1xf32>
    %453 = tpu.concatenate %451, %452 in 1 : vector<8x127xf32>, vector<8x1xf32> -> vector<8x128xf32>
    %cst_95 = arith.constant 0.000000e+00 : f32
    %454 = vector.shape_cast %104 : vector<1x128xi1> to vector<1x128xi1>
    %455 = vector.broadcast %454 : vector<1x128xi1> to vector<8x128xi1>
    %456 = vector.broadcast %cst_95 : f32 to vector<8x128xf32>
    %457 = arith.select %455, %453, %456 : vector<8x128xi1>, vector<8x128xf32>
    %458 = vector.broadcast %450 : vector<8x1xf32> to vector<8x128xf32>
    %459 = arith.mulf %458, %457 : vector<8x128xf32>
    %460 = vector.extract_strided_slice %426 {offsets = [0, 4], sizes = [8, 1], strides = [1, 1]} : vector<8x8xf32> to vector<8x1xf32>
    %461 = vector.extract_strided_slice %425 {offsets = [0, 2], sizes = [8, 126], strides = [1, 1]} : vector<8x128xf32> to vector<8x126xf32>
    %462 = vector.extract_strided_slice %425 {offsets = [0, 0], sizes = [8, 2], strides = [1, 1]} : vector<8x128xf32> to vector<8x2xf32>
    %463 = tpu.concatenate %461, %462 in 1 : vector<8x126xf32>, vector<8x2xf32> -> vector<8x128xf32>
    %cst_96 = arith.constant 0.000000e+00 : f32
    %464 = vector.shape_cast %179 : vector<1x128xi1> to vector<1x128xi1>
    %465 = vector.broadcast %464 : vector<1x128xi1> to vector<8x128xi1>
    %466 = vector.broadcast %cst_96 : f32 to vector<8x128xf32>
    %467 = arith.select %465, %463, %466 : vector<8x128xi1>, vector<8x128xf32>
    %468 = vector.broadcast %460 : vector<8x1xf32> to vector<8x128xf32>
    %469 = arith.mulf %468, %467 : vector<8x128xf32>
    %470 = arith.addf %436, %446 : vector<8x128xf32>
    %471 = arith.addf %449, %459 : vector<8x128xf32>
    %472 = arith.addf %470, %471 : vector<8x128xf32>
    %473 = arith.addf %472, %469 : vector<8x128xf32>
    %c64 = arith.constant 64 : index
    %c0_97 = arith.constant 0 : index
    %474 = vector.load %arg3[%c64, %c0_97] : memref<120x8xf32, #tpu.memory_space<vmem>>, vector<8x8xf32>
    %475 = arith.truncf %474 : vector<8x8xf32> to vector<8x8xbf16>
    %476 = arith.truncf %473 : vector<8x128xf32> to vector<8x128xbf16>
    %cst_98 = arith.constant dense<0.000000e+00> : vector<8x128xf32>
    %477 = tpu.matmul %475, %476, %cst_98 {dimension_numbers = #tpu.dot_dimension_numbers<[1], [0], [0], [1], [0, 0, 1, 1], [], []>} : vector<8x8xbf16>, vector<8x128xbf16>, vector<8x128xf32> -> vector<8x128xf32>
    %c0_99 = arith.constant 0 : index
    %c8_100 = arith.constant 8 : index
    %478 = vector.load %arg5[%c0_99, %c8_100] : memref<8x15xf32, #tpu.memory_space<vmem>>, vector<8x1xf32>
    %479 = vector.broadcast %478 : vector<8x1xf32> to vector<8x128xf32>
    %480 = arith.addf %477, %479 : vector<8x128xf32>
    %c48_101 = arith.constant 48 : index
    %c0_102 = arith.constant 0 : index
    %481 = vector.load %arg4[%c48_101, %c0_102] : memref<96x8xf32, #tpu.memory_space<vmem>>, vector<8x8xf32>
    %482 = vector.extract_strided_slice %481 {offsets = [0, 0], sizes = [8, 1], strides = [1, 1]} : vector<8x8xf32> to vector<8x1xf32>
    %483 = vector.extract_strided_slice %40 {offsets = [0, 127], sizes = [8, 1], strides = [1, 1]} : vector<8x128xf32> to vector<8x1xf32>
    %484 = vector.extract_strided_slice %40 {offsets = [0, 0], sizes = [8, 127], strides = [1, 1]} : vector<8x128xf32> to vector<8x127xf32>
    %485 = tpu.concatenate %483, %484 in 1 : vector<8x1xf32>, vector<8x127xf32> -> vector<8x128xf32>
    %cst_103 = arith.constant 0.000000e+00 : f32
    %486 = vector.shape_cast %50 : vector<1x128xi1> to vector<1x128xi1>
    %487 = vector.broadcast %486 : vector<1x128xi1> to vector<8x128xi1>
    %488 = vector.broadcast %cst_103 : f32 to vector<8x128xf32>
    %489 = arith.select %487, %485, %488 : vector<8x128xi1>, vector<8x128xf32>
    %490 = vector.broadcast %482 : vector<8x1xf32> to vector<8x128xf32>
    %491 = arith.mulf %490, %489 : vector<8x128xf32>
    %492 = vector.extract_strided_slice %481 {offsets = [0, 1], sizes = [8, 1], strides = [1, 1]} : vector<8x8xf32> to vector<8x1xf32>
    %493 = vector.broadcast %492 : vector<8x1xf32> to vector<8x128xf32>
    %494 = arith.mulf %493, %38 : vector<8x128xf32>
    %495 = vector.extract_strided_slice %481 {offsets = [0, 2], sizes = [8, 1], strides = [1, 1]} : vector<8x8xf32> to vector<8x1xf32>
    %496 = vector.broadcast %495 : vector<8x1xf32> to vector<8x128xf32>
    %497 = arith.mulf %496, %40 : vector<8x128xf32>
    %498 = arith.addf %491, %494 : vector<8x128xf32>
    %499 = arith.addf %498, %497 : vector<8x128xf32>
    %c72 = arith.constant 72 : index
    %c0_104 = arith.constant 0 : index
    %500 = vector.load %arg3[%c72, %c0_104] : memref<120x8xf32, #tpu.memory_space<vmem>>, vector<8x8xf32>
    %501 = arith.truncf %500 : vector<8x8xf32> to vector<8x8xbf16>
    %502 = arith.truncf %499 : vector<8x128xf32> to vector<8x128xbf16>
    %cst_105 = arith.constant dense<0.000000e+00> : vector<8x128xf32>
    %503 = tpu.matmul %501, %502, %cst_105 {dimension_numbers = #tpu.dot_dimension_numbers<[1], [0], [0], [1], [0, 0, 1, 1], [], []>} : vector<8x8xbf16>, vector<8x128xbf16>, vector<8x128xf32> -> vector<8x128xf32>
    %c0_106 = arith.constant 0 : index
    %c9 = arith.constant 9 : index
    %504 = vector.load %arg5[%c0_106, %c9] : memref<8x15xf32, #tpu.memory_space<vmem>>, vector<8x1xf32>
    %505 = vector.broadcast %504 : vector<8x1xf32> to vector<8x128xf32>
    %506 = arith.addf %503, %505 : vector<8x128xf32>
    %cst_107 = arith.constant 0.000000e+00 : f32
    %507 = vector.broadcast %cst_107 : f32 to vector<8x128xf32>
    %508 = arith.maximumf %506, %507 : vector<8x128xf32>
    %c56_108 = arith.constant 56 : index
    %c0_109 = arith.constant 0 : index
    %509 = vector.load %arg4[%c56_108, %c0_109] : memref<96x8xf32, #tpu.memory_space<vmem>>, vector<8x8xf32>
    %510 = vector.extract_strided_slice %509 {offsets = [0, 0], sizes = [8, 1], strides = [1, 1]} : vector<8x8xf32> to vector<8x1xf32>
    %511 = vector.extract_strided_slice %508 {offsets = [0, 127], sizes = [8, 1], strides = [1, 1]} : vector<8x128xf32> to vector<8x1xf32>
    %512 = vector.extract_strided_slice %508 {offsets = [0, 0], sizes = [8, 127], strides = [1, 1]} : vector<8x128xf32> to vector<8x127xf32>
    %513 = tpu.concatenate %511, %512 in 1 : vector<8x1xf32>, vector<8x127xf32> -> vector<8x128xf32>
    %cst_110 = arith.constant 0.000000e+00 : f32
    %514 = vector.shape_cast %50 : vector<1x128xi1> to vector<1x128xi1>
    %515 = vector.broadcast %514 : vector<1x128xi1> to vector<8x128xi1>
    %516 = vector.broadcast %cst_110 : f32 to vector<8x128xf32>
    %517 = arith.select %515, %513, %516 : vector<8x128xi1>, vector<8x128xf32>
    %518 = vector.broadcast %510 : vector<8x1xf32> to vector<8x128xf32>
    %519 = arith.mulf %518, %517 : vector<8x128xf32>
    %520 = vector.extract_strided_slice %509 {offsets = [0, 1], sizes = [8, 1], strides = [1, 1]} : vector<8x8xf32> to vector<8x1xf32>
    %521 = vector.broadcast %520 : vector<8x1xf32> to vector<8x128xf32>
    %522 = arith.mulf %521, %508 : vector<8x128xf32>
    %523 = vector.extract_strided_slice %509 {offsets = [0, 2], sizes = [8, 1], strides = [1, 1]} : vector<8x8xf32> to vector<8x1xf32>
    %524 = vector.extract_strided_slice %508 {offsets = [0, 1], sizes = [8, 127], strides = [1, 1]} : vector<8x128xf32> to vector<8x127xf32>
    %525 = vector.extract_strided_slice %508 {offsets = [0, 0], sizes = [8, 1], strides = [1, 1]} : vector<8x128xf32> to vector<8x1xf32>
    %526 = tpu.concatenate %524, %525 in 1 : vector<8x127xf32>, vector<8x1xf32> -> vector<8x128xf32>
    %cst_111 = arith.constant 0.000000e+00 : f32
    %527 = vector.shape_cast %104 : vector<1x128xi1> to vector<1x128xi1>
    %528 = vector.broadcast %527 : vector<1x128xi1> to vector<8x128xi1>
    %529 = vector.broadcast %cst_111 : f32 to vector<8x128xf32>
    %530 = arith.select %528, %526, %529 : vector<8x128xi1>, vector<8x128xf32>
    %531 = vector.broadcast %523 : vector<8x1xf32> to vector<8x128xf32>
    %532 = arith.mulf %531, %530 : vector<8x128xf32>
    %533 = arith.addf %519, %522 : vector<8x128xf32>
    %534 = arith.addf %533, %532 : vector<8x128xf32>
    %c80 = arith.constant 80 : index
    %c0_112 = arith.constant 0 : index
    %535 = vector.load %arg3[%c80, %c0_112] : memref<120x8xf32, #tpu.memory_space<vmem>>, vector<8x8xf32>
    %536 = arith.truncf %535 : vector<8x8xf32> to vector<8x8xbf16>
    %537 = arith.truncf %534 : vector<8x128xf32> to vector<8x128xbf16>
    %cst_113 = arith.constant dense<0.000000e+00> : vector<8x128xf32>
    %538 = tpu.matmul %536, %537, %cst_113 {dimension_numbers = #tpu.dot_dimension_numbers<[1], [0], [0], [1], [0, 0, 1, 1], [], []>} : vector<8x8xbf16>, vector<8x128xbf16>, vector<8x128xf32> -> vector<8x128xf32>
    %c0_114 = arith.constant 0 : index
    %c10 = arith.constant 10 : index
    %539 = vector.load %arg5[%c0_114, %c10] : memref<8x15xf32, #tpu.memory_space<vmem>>, vector<8x1xf32>
    %540 = vector.broadcast %539 : vector<8x1xf32> to vector<8x128xf32>
    %541 = arith.addf %538, %540 : vector<8x128xf32>
    %542 = arith.addf %480, %541 : vector<8x128xf32>
    %cst_115 = arith.constant 0.000000e+00 : f32
    %543 = vector.broadcast %cst_115 : f32 to vector<8x128xf32>
    %544 = arith.maximumf %542, %543 : vector<8x128xf32>
    %c64_116 = arith.constant 64 : index
    %c0_117 = arith.constant 0 : index
    %545 = vector.load %arg4[%c64_116, %c0_117] : memref<96x8xf32, #tpu.memory_space<vmem>>, vector<8x8xf32>
    %546 = vector.extract_strided_slice %545 {offsets = [0, 0], sizes = [8, 1], strides = [1, 1]} : vector<8x8xf32> to vector<8x1xf32>
    %547 = vector.extract_strided_slice %544 {offsets = [0, 127], sizes = [8, 1], strides = [1, 1]} : vector<8x128xf32> to vector<8x1xf32>
    %548 = vector.extract_strided_slice %544 {offsets = [0, 0], sizes = [8, 127], strides = [1, 1]} : vector<8x128xf32> to vector<8x127xf32>
    %549 = tpu.concatenate %547, %548 in 1 : vector<8x1xf32>, vector<8x127xf32> -> vector<8x128xf32>
    %cst_118 = arith.constant 0.000000e+00 : f32
    %550 = vector.shape_cast %50 : vector<1x128xi1> to vector<1x128xi1>
    %551 = vector.broadcast %550 : vector<1x128xi1> to vector<8x128xi1>
    %552 = vector.broadcast %cst_118 : f32 to vector<8x128xf32>
    %553 = arith.select %551, %549, %552 : vector<8x128xi1>, vector<8x128xf32>
    %554 = vector.broadcast %546 : vector<8x1xf32> to vector<8x128xf32>
    %555 = arith.mulf %554, %553 : vector<8x128xf32>
    %556 = vector.extract_strided_slice %545 {offsets = [0, 1], sizes = [8, 1], strides = [1, 1]} : vector<8x8xf32> to vector<8x1xf32>
    %557 = vector.broadcast %556 : vector<8x1xf32> to vector<8x128xf32>
    %558 = arith.mulf %557, %544 : vector<8x128xf32>
    %559 = vector.extract_strided_slice %545 {offsets = [0, 2], sizes = [8, 1], strides = [1, 1]} : vector<8x8xf32> to vector<8x1xf32>
    %560 = vector.extract_strided_slice %544 {offsets = [0, 1], sizes = [8, 127], strides = [1, 1]} : vector<8x128xf32> to vector<8x127xf32>
    %561 = vector.extract_strided_slice %544 {offsets = [0, 0], sizes = [8, 1], strides = [1, 1]} : vector<8x128xf32> to vector<8x1xf32>
    %562 = tpu.concatenate %560, %561 in 1 : vector<8x127xf32>, vector<8x1xf32> -> vector<8x128xf32>
    %cst_119 = arith.constant 0.000000e+00 : f32
    %563 = vector.shape_cast %104 : vector<1x128xi1> to vector<1x128xi1>
    %564 = vector.broadcast %563 : vector<1x128xi1> to vector<8x128xi1>
    %565 = vector.broadcast %cst_119 : f32 to vector<8x128xf32>
    %566 = arith.select %564, %562, %565 : vector<8x128xi1>, vector<8x128xf32>
    %567 = vector.broadcast %559 : vector<8x1xf32> to vector<8x128xf32>
    %568 = arith.mulf %567, %566 : vector<8x128xf32>
    %569 = arith.addf %555, %558 : vector<8x128xf32>
    %570 = arith.addf %569, %568 : vector<8x128xf32>
    %c88 = arith.constant 88 : index
    %c0_120 = arith.constant 0 : index
    %571 = vector.load %arg3[%c88, %c0_120] : memref<120x8xf32, #tpu.memory_space<vmem>>, vector<8x8xf32>
    %572 = arith.truncf %571 : vector<8x8xf32> to vector<8x8xbf16>
    %573 = arith.truncf %570 : vector<8x128xf32> to vector<8x128xbf16>
    %cst_121 = arith.constant dense<0.000000e+00> : vector<8x128xf32>
    %574 = tpu.matmul %572, %573, %cst_121 {dimension_numbers = #tpu.dot_dimension_numbers<[1], [0], [0], [1], [0, 0, 1, 1], [], []>} : vector<8x8xbf16>, vector<8x128xbf16>, vector<8x128xf32> -> vector<8x128xf32>
    %c0_122 = arith.constant 0 : index
    %c11 = arith.constant 11 : index
    %575 = vector.load %arg5[%c0_122, %c11] : memref<8x15xf32, #tpu.memory_space<vmem>>, vector<8x1xf32>
    %576 = vector.broadcast %575 : vector<8x1xf32> to vector<8x128xf32>
    %577 = arith.addf %574, %576 : vector<8x128xf32>
    %cst_123 = arith.constant 0.000000e+00 : f32
    %578 = vector.broadcast %cst_123 : f32 to vector<8x128xf32>
    %579 = arith.maximumf %577, %578 : vector<8x128xf32>
    %c72_124 = arith.constant 72 : index
    %c0_125 = arith.constant 0 : index
    %580 = vector.load %arg4[%c72_124, %c0_125] : memref<96x8xf32, #tpu.memory_space<vmem>>, vector<8x8xf32>
    %581 = vector.extract_strided_slice %580 {offsets = [0, 0], sizes = [8, 1], strides = [1, 1]} : vector<8x8xf32> to vector<8x1xf32>
    %582 = vector.extract_strided_slice %579 {offsets = [0, 127], sizes = [8, 1], strides = [1, 1]} : vector<8x128xf32> to vector<8x1xf32>
    %583 = vector.extract_strided_slice %579 {offsets = [0, 0], sizes = [8, 127], strides = [1, 1]} : vector<8x128xf32> to vector<8x127xf32>
    %584 = tpu.concatenate %582, %583 in 1 : vector<8x1xf32>, vector<8x127xf32> -> vector<8x128xf32>
    %cst_126 = arith.constant 0.000000e+00 : f32
    %585 = vector.shape_cast %50 : vector<1x128xi1> to vector<1x128xi1>
    %586 = vector.broadcast %585 : vector<1x128xi1> to vector<8x128xi1>
    %587 = vector.broadcast %cst_126 : f32 to vector<8x128xf32>
    %588 = arith.select %586, %584, %587 : vector<8x128xi1>, vector<8x128xf32>
    %589 = vector.broadcast %581 : vector<8x1xf32> to vector<8x128xf32>
    %590 = arith.mulf %589, %588 : vector<8x128xf32>
    %591 = vector.extract_strided_slice %580 {offsets = [0, 1], sizes = [8, 1], strides = [1, 1]} : vector<8x8xf32> to vector<8x1xf32>
    %592 = vector.broadcast %591 : vector<8x1xf32> to vector<8x128xf32>
    %593 = arith.mulf %592, %579 : vector<8x128xf32>
    %594 = vector.extract_strided_slice %580 {offsets = [0, 2], sizes = [8, 1], strides = [1, 1]} : vector<8x8xf32> to vector<8x1xf32>
    %595 = vector.extract_strided_slice %579 {offsets = [0, 1], sizes = [8, 127], strides = [1, 1]} : vector<8x128xf32> to vector<8x127xf32>
    %596 = vector.extract_strided_slice %579 {offsets = [0, 0], sizes = [8, 1], strides = [1, 1]} : vector<8x128xf32> to vector<8x1xf32>
    %597 = tpu.concatenate %595, %596 in 1 : vector<8x127xf32>, vector<8x1xf32> -> vector<8x128xf32>
    %cst_127 = arith.constant 0.000000e+00 : f32
    %598 = vector.shape_cast %104 : vector<1x128xi1> to vector<1x128xi1>
    %599 = vector.broadcast %598 : vector<1x128xi1> to vector<8x128xi1>
    %600 = vector.broadcast %cst_127 : f32 to vector<8x128xf32>
    %601 = arith.select %599, %597, %600 : vector<8x128xi1>, vector<8x128xf32>
    %602 = vector.broadcast %594 : vector<8x1xf32> to vector<8x128xf32>
    %603 = arith.mulf %602, %601 : vector<8x128xf32>
    %604 = arith.addf %590, %593 : vector<8x128xf32>
    %605 = arith.addf %604, %603 : vector<8x128xf32>
    %c96 = arith.constant 96 : index
    %c0_128 = arith.constant 0 : index
    %606 = vector.load %arg3[%c96, %c0_128] : memref<120x8xf32, #tpu.memory_space<vmem>>, vector<8x8xf32>
    %607 = arith.truncf %606 : vector<8x8xf32> to vector<8x8xbf16>
    %608 = arith.truncf %605 : vector<8x128xf32> to vector<8x128xbf16>
    %cst_129 = arith.constant dense<0.000000e+00> : vector<8x128xf32>
    %609 = tpu.matmul %607, %608, %cst_129 {dimension_numbers = #tpu.dot_dimension_numbers<[1], [0], [0], [1], [0, 0, 1, 1], [], []>} : vector<8x8xbf16>, vector<8x128xbf16>, vector<8x128xf32> -> vector<8x128xf32>
    %c0_130 = arith.constant 0 : index
    %c12 = arith.constant 12 : index
    %610 = vector.load %arg5[%c0_130, %c12] : memref<8x15xf32, #tpu.memory_space<vmem>>, vector<8x1xf32>
    %611 = vector.broadcast %610 : vector<8x1xf32> to vector<8x128xf32>
    %612 = arith.addf %609, %611 : vector<8x128xf32>
    %613 = arith.addf %612, %67 : vector<8x128xf32>
    %c80_131 = arith.constant 80 : index
    %c0_132 = arith.constant 0 : index
    %614 = vector.load %arg4[%c80_131, %c0_132] : memref<96x8xf32, #tpu.memory_space<vmem>>, vector<8x8xf32>
    %615 = vector.extract_strided_slice %614 {offsets = [0, 0], sizes = [8, 1], strides = [1, 1]} : vector<8x8xf32> to vector<8x1xf32>
    %616 = vector.extract_strided_slice %22 {offsets = [0, 127], sizes = [8, 1], strides = [1, 1]} : vector<8x128xf32> to vector<8x1xf32>
    %617 = vector.extract_strided_slice %22 {offsets = [0, 0], sizes = [8, 127], strides = [1, 1]} : vector<8x128xf32> to vector<8x127xf32>
    %618 = tpu.concatenate %616, %617 in 1 : vector<8x1xf32>, vector<8x127xf32> -> vector<8x128xf32>
    %cst_133 = arith.constant 0.000000e+00 : f32
    %619 = vector.shape_cast %50 : vector<1x128xi1> to vector<1x128xi1>
    %620 = vector.broadcast %619 : vector<1x128xi1> to vector<8x128xi1>
    %621 = vector.broadcast %cst_133 : f32 to vector<8x128xf32>
    %622 = arith.select %620, %618, %621 : vector<8x128xi1>, vector<8x128xf32>
    %623 = vector.broadcast %615 : vector<8x1xf32> to vector<8x128xf32>
    %624 = arith.mulf %623, %622 : vector<8x128xf32>
    %625 = vector.extract_strided_slice %614 {offsets = [0, 1], sizes = [8, 1], strides = [1, 1]} : vector<8x8xf32> to vector<8x1xf32>
    %626 = vector.broadcast %625 : vector<8x1xf32> to vector<8x128xf32>
    %627 = arith.mulf %626, %20 : vector<8x128xf32>
    %628 = vector.extract_strided_slice %614 {offsets = [0, 2], sizes = [8, 1], strides = [1, 1]} : vector<8x8xf32> to vector<8x1xf32>
    %629 = vector.broadcast %628 : vector<8x1xf32> to vector<8x128xf32>
    %630 = arith.mulf %629, %22 : vector<8x128xf32>
    %631 = arith.addf %624, %627 : vector<8x128xf32>
    %632 = arith.addf %631, %630 : vector<8x128xf32>
    %c104 = arith.constant 104 : index
    %c0_134 = arith.constant 0 : index
    %633 = vector.load %arg3[%c104, %c0_134] : memref<120x8xf32, #tpu.memory_space<vmem>>, vector<8x8xf32>
    %634 = arith.truncf %633 : vector<8x8xf32> to vector<8x8xbf16>
    %635 = arith.truncf %632 : vector<8x128xf32> to vector<8x128xbf16>
    %cst_135 = arith.constant dense<0.000000e+00> : vector<8x128xf32>
    %636 = tpu.matmul %634, %635, %cst_135 {dimension_numbers = #tpu.dot_dimension_numbers<[1], [0], [0], [1], [0, 0, 1, 1], [], []>} : vector<8x8xbf16>, vector<8x128xbf16>, vector<8x128xf32> -> vector<8x128xf32>
    %c0_136 = arith.constant 0 : index
    %c13 = arith.constant 13 : index
    %637 = vector.load %arg5[%c0_136, %c13] : memref<8x15xf32, #tpu.memory_space<vmem>>, vector<8x1xf32>
    %638 = vector.broadcast %637 : vector<8x1xf32> to vector<8x128xf32>
    %639 = arith.addf %636, %638 : vector<8x128xf32>
    %cst_137 = arith.constant 0.000000e+00 : f32
    %640 = vector.broadcast %cst_137 : f32 to vector<8x128xf32>
    %641 = arith.maximumf %639, %640 : vector<8x128xf32>
    %c88_138 = arith.constant 88 : index
    %c0_139 = arith.constant 0 : index
    %642 = vector.load %arg4[%c88_138, %c0_139] : memref<96x8xf32, #tpu.memory_space<vmem>>, vector<8x8xf32>
    %643 = vector.extract_strided_slice %642 {offsets = [0, 0], sizes = [8, 1], strides = [1, 1]} : vector<8x8xf32> to vector<8x1xf32>
    %644 = vector.extract_strided_slice %641 {offsets = [0, 127], sizes = [8, 1], strides = [1, 1]} : vector<8x128xf32> to vector<8x1xf32>
    %645 = vector.extract_strided_slice %641 {offsets = [0, 0], sizes = [8, 127], strides = [1, 1]} : vector<8x128xf32> to vector<8x127xf32>
    %646 = tpu.concatenate %644, %645 in 1 : vector<8x1xf32>, vector<8x127xf32> -> vector<8x128xf32>
    %cst_140 = arith.constant 0.000000e+00 : f32
    %647 = vector.shape_cast %50 : vector<1x128xi1> to vector<1x128xi1>
    %648 = vector.broadcast %647 : vector<1x128xi1> to vector<8x128xi1>
    %649 = vector.broadcast %cst_140 : f32 to vector<8x128xf32>
    %650 = arith.select %648, %646, %649 : vector<8x128xi1>, vector<8x128xf32>
    %651 = vector.broadcast %643 : vector<8x1xf32> to vector<8x128xf32>
    %652 = arith.mulf %651, %650 : vector<8x128xf32>
    %653 = vector.extract_strided_slice %642 {offsets = [0, 1], sizes = [8, 1], strides = [1, 1]} : vector<8x8xf32> to vector<8x1xf32>
    %654 = vector.broadcast %653 : vector<8x1xf32> to vector<8x128xf32>
    %655 = arith.mulf %654, %641 : vector<8x128xf32>
    %656 = vector.extract_strided_slice %642 {offsets = [0, 2], sizes = [8, 1], strides = [1, 1]} : vector<8x8xf32> to vector<8x1xf32>
    %657 = vector.extract_strided_slice %641 {offsets = [0, 1], sizes = [8, 127], strides = [1, 1]} : vector<8x128xf32> to vector<8x127xf32>
    %658 = vector.extract_strided_slice %641 {offsets = [0, 0], sizes = [8, 1], strides = [1, 1]} : vector<8x128xf32> to vector<8x1xf32>
    %659 = tpu.concatenate %657, %658 in 1 : vector<8x127xf32>, vector<8x1xf32> -> vector<8x128xf32>
    %cst_141 = arith.constant 0.000000e+00 : f32
    %660 = vector.shape_cast %104 : vector<1x128xi1> to vector<1x128xi1>
    %661 = vector.broadcast %660 : vector<1x128xi1> to vector<8x128xi1>
    %662 = vector.broadcast %cst_141 : f32 to vector<8x128xf32>
    %663 = arith.select %661, %659, %662 : vector<8x128xi1>, vector<8x128xf32>
    %664 = vector.broadcast %656 : vector<8x1xf32> to vector<8x128xf32>
    %665 = arith.mulf %664, %663 : vector<8x128xf32>
    %666 = arith.addf %652, %655 : vector<8x128xf32>
    %667 = arith.addf %666, %665 : vector<8x128xf32>
    %c112 = arith.constant 112 : index
    %c0_142 = arith.constant 0 : index
    %668 = vector.load %arg3[%c112, %c0_142] : memref<120x8xf32, #tpu.memory_space<vmem>>, vector<8x8xf32>
    %669 = arith.truncf %668 : vector<8x8xf32> to vector<8x8xbf16>
    %670 = arith.truncf %667 : vector<8x128xf32> to vector<8x128xbf16>
    %cst_143 = arith.constant dense<0.000000e+00> : vector<8x128xf32>
    %671 = tpu.matmul %669, %670, %cst_143 {dimension_numbers = #tpu.dot_dimension_numbers<[1], [0], [0], [1], [0, 0, 1, 1], [], []>} : vector<8x8xbf16>, vector<8x128xbf16>, vector<8x128xf32> -> vector<8x128xf32>
    %c0_144 = arith.constant 0 : index
    %c14 = arith.constant 14 : index
    %672 = vector.load %arg5[%c0_144, %c14] : memref<8x15xf32, #tpu.memory_space<vmem>>, vector<8x1xf32>
    %673 = vector.broadcast %672 : vector<8x1xf32> to vector<8x128xf32>
    %674 = arith.addf %671, %673 : vector<8x128xf32>
    %c16_145 = arith.constant 16 : index
    %c0_146 = arith.constant 0 : index
    %675 = vector.load %arg3[%c16_145, %c0_146] : memref<120x8xf32, #tpu.memory_space<vmem>>, vector<8x8xf32>
    %676 = arith.truncf %675 : vector<8x8xf32> to vector<8x8xbf16>
    %677 = arith.truncf %38 : vector<8x128xf32> to vector<8x128xbf16>
    %cst_147 = arith.constant dense<0.000000e+00> : vector<8x128xf32>
    %678 = tpu.matmul %676, %677, %cst_147 {dimension_numbers = #tpu.dot_dimension_numbers<[1], [0], [0], [1], [0, 0, 1, 1], [], []>} : vector<8x8xbf16>, vector<8x128xbf16>, vector<8x128xf32> -> vector<8x128xf32>
    %c0_148 = arith.constant 0 : index
    %c2 = arith.constant 2 : index
    %679 = vector.load %arg5[%c0_148, %c2] : memref<8x15xf32, #tpu.memory_space<vmem>>, vector<8x1xf32>
    %680 = vector.broadcast %679 : vector<8x1xf32> to vector<8x128xf32>
    %681 = arith.addf %678, %680 : vector<8x128xf32>
    %682 = arith.addf %674, %681 : vector<8x128xf32>
    %c0_149 = arith.constant 0 : index
    %c0_150 = arith.constant 0 : index
    %683 = vector.load %arg6[%c0_149, %c0_150] : memref<40x128xf32, #tpu.memory_space<vmem>>, vector<8x128xf32>
    tpu.vector_store %arg6[%c0_149, %c0_150], %207 {strides = array<i32>} : memref<40x128xf32, #tpu.memory_space<vmem>>, vector<8x128xf32>,
    %c8_151 = arith.constant 8 : index
    %c0_152 = arith.constant 0 : index
    %684 = vector.load %arg6[%c8_151, %c0_152] : memref<40x128xf32, #tpu.memory_space<vmem>>, vector<8x128xf32>
    tpu.vector_store %arg6[%c8_151, %c0_152], %375 {strides = array<i32>} : memref<40x128xf32, #tpu.memory_space<vmem>>, vector<8x128xf32>,
    %c16_153 = arith.constant 16 : index
    %c0_154 = arith.constant 0 : index
    %685 = vector.load %arg6[%c16_153, %c0_154] : memref<40x128xf32, #tpu.memory_space<vmem>>, vector<8x128xf32>
    tpu.vector_store %arg6[%c16_153, %c0_154], %542 {strides = array<i32>} : memref<40x128xf32, #tpu.memory_space<vmem>>, vector<8x128xf32>,
    %c24_155 = arith.constant 24 : index
    %c0_156 = arith.constant 0 : index
    %686 = vector.load %arg6[%c24_155, %c0_156] : memref<40x128xf32, #tpu.memory_space<vmem>>, vector<8x128xf32>
    tpu.vector_store %arg6[%c24_155, %c0_156], %613 {strides = array<i32>} : memref<40x128xf32, #tpu.memory_space<vmem>>, vector<8x128xf32>,
    %c32_157 = arith.constant 32 : index
    %c0_158 = arith.constant 0 : index
    %687 = vector.load %arg6[%c32_157, %c0_158] : memref<40x128xf32, #tpu.memory_space<vmem>>, vector<8x128xf32>
    tpu.vector_store %arg6[%c32_157, %c0_158], %682 {strides = array<i32>} : memref<40x128xf32, #tpu.memory_space<vmem>>, vector<8x128xf32>,
    return
  }
  func.func @transform_0(%arg0: i32) -> (i32, i32) {
    %c0_i32 = arith.constant 0 : i32
    %c0_i32_0 = arith.constant 0 : i32
    return %c0_i32, %arg0 : i32, i32
  }
  func.func @transform_1(%arg0: i32) -> (i32, i32) {
    %c0_i32 = arith.constant 0 : i32
    %c0_i32_0 = arith.constant 0 : i32
    return %c0_i32, %arg0 : i32, i32
  }
  func.func @transform_2(%arg0: i32) -> (i32, i32) {
    %c0_i32 = arith.constant 0 : i32
    %c0_i32_0 = arith.constant 0 : i32
    %c0_i32_1 = arith.constant 0 : i32
    return %c0_i32, %c0_i32_0 : i32, i32
  }
  func.func @transform_3(%arg0: i32) -> (i32, i32) {
    %c0_i32 = arith.constant 0 : i32
    %c0_i32_0 = arith.constant 0 : i32
    %c0_i32_1 = arith.constant 0 : i32
    return %c0_i32, %c0_i32_0 : i32, i32
  }
  func.func @transform_4(%arg0: i32) -> (i32, i32) {
    %c0_i32 = arith.constant 0 : i32
    %c0_i32_0 = arith.constant 0 : i32
    %c0_i32_1 = arith.constant 0 : i32
    return %c0_i32, %c0_i32_0 : i32, i32
  }
  func.func @transform_5(%arg0: i32) -> (i32, i32) {
    %c0_i32 = arith.constant 0 : i32
    %c0_i32_0 = arith.constant 0 : i32
    return %c0_i32, %arg0 : i32, i32
  }
}

</mosaic_0001>

<llo_original>
// kernel: cell_stem0.1
$region0: #{cell_stem0.1}
  #allocation0 [shape = 'u32[]', space=smem, size = 0x4, offset = 0x4, fixed_abs, tag = 'smem constant byte address 0x4 - core index']
  #allocation1 [shape = 'u32[144,128]{1,0:T(1,128)}', space=vmem, size = 0x12000, scoped, tag = 'internal scratch']
  %s0 = inlined_call_operand.vmem [shape: f32[8,128], index: 0, kind: input, shape index: {}]
  %s1 = inlined_call_operand.vmem [shape: f32[8,128], index: 1, kind: input, shape index: {}]
  %s2 = inlined_call_operand.vmem [shape: f32[120,8], index: 2, kind: input, shape index: {}]
  %s3 = inlined_call_operand.vmem [shape: f32[96,8], index: 3, kind: input, shape index: {}]
  %s4 = inlined_call_operand.vmem [shape: f32[8,15], index: 4, kind: input, shape index: {}]
  %s5 = inlined_call_operand.vmem [shape: f32[40,128], index: 5, kind: output, shape index: {}]
  %s6 = sld [smem:[#allocation0]]
  $region30: #{cell_stem0.1} parent=0
    _
  %s8 = ssub.s32 1, %s6
  %s9 = scalar_select 0, %s8, %s6
  // Predicated region
  $region2: #{cell_stem0.1} parent=0 // pred_check
    _
  $region3: #{cell_stem0.1} parent=0 // pred_check_branch
    %11 = sbr.rel (0) target = $region5
  $region4: #{cell_stem0.1} parent=0 // pred_region
    _
  $region5: #{cell_stem0.1} parent=0 // pred_fallthru
    _
  // Predicated region
  $region6: #{cell_stem0.1} parent=0 // pred_check
    _
  $region7: #{cell_stem0.1} parent=0 // pred_check_branch
    %13 = sbr.rel (0) target = $region9
  $region8: #{cell_stem0.1} parent=0 // pred_region
    _
  $region9: #{cell_stem0.1} parent=0 // pred_fallthru
    _
  // Predicated region
  $region10: #{cell_stem0.1} parent=0 // pred_check
    _
  $region11: #{cell_stem0.1} parent=0 // pred_check_branch
    %15 = sbr.rel (0) target = $region13
  $region12: #{cell_stem0.1} parent=0 // pred_region
    _
  $region13: #{cell_stem0.1} parent=0 // pred_fallthru
    _
  // Predicated region
  $region14: #{cell_stem0.1} parent=0 // pred_check
    _
  $region15: #{cell_stem0.1} parent=0 // pred_check_branch
    %17 = sbr.rel (0) target = $region17
  $region16: #{cell_stem0.1} parent=0 // pred_region
    _
  $region17: #{cell_stem0.1} parent=0 // pred_fallthru
    _
  // Predicated region
  $region18: #{cell_stem0.1} parent=0 // pred_check
    _
  $region19: #{cell_stem0.1} parent=0 // pred_check_branch
    %19 = sbr.rel (0) target = $region21
  $region20: #{cell_stem0.1} parent=0 // pred_region
    _
  $region21: #{cell_stem0.1} parent=0 // pred_fallthru
    _
  %v21 = vlaneseq
  %v22 = vand.u32 %v21, 127
  %vm23 = vcmp.lt.s32.totalorder %v22, 0
  %v24 = vsub.s32 0, %v22
  %v25 = vsel %vm23, %v24, %v22
  %v26 = vshrl.u32 %v25, 3
  %v27 = vand.u32 %v25, 7
  %v28 = vsub.s32 0, %v27
  %v29 = vsel %vm23, %v28, %v27
  %vm30 = vcmp.ne.s32.totalorder %v29, 0
  %vm31 = vcmp.lt.s32.totalorder %v29, 0
  %vm32 = vmand %vm31, %vm30
  %v33 = vadd.s32 %v29, 8
  %v34 = vsel %vm32, %v33, %v29
  %v35 = vld [vmem:[%s0] sm:$0xff]
  %v36 = vld [vmem:[%s1] sm:$0xff]
  %v37 = vmax.f32 %v35, 0.0
  %v38 = vmax.f32 %v36, 0.0
  %v39 = vld [vmem:[%s2] sm:$0xff]
  %v40 = vpack.c.bf16 %v39, %v39
  %v41 = vpack.c.bf16 %v37, %v37
  %v42 = vld [vmem:[%s4] sm:$0xff]
  %44 = vset.pattern.permute.xlu0 0
  %45 = vperm.xlu0 %44, %v42
  %v46 = vpop.permute.xlu0 %45
  %vm48 = vcmask 64512
  %v50 = vsel %vm48, %v40, 0
  %vm52 = vcmask 1043456
  %v54 = vsel %vm52, %v41, 0
  %56 = vmatprep.subr.bf16.mxu0 0
  %57 = vmatpush1.bf16.msra.mxu0 %v54
  %58 = vmatprep.subr.bf16.mxu0 0
  %59 = vmatpush1.bf16.msra.mxu0 0
  %60 = vmatprep.subr.bf16.mxu0 0
  %61 = vmatpush1.bf16.msra.mxu0 0
  %62 = vmatprep.subr.bf16.mxu0 0
  %63 = vmatpush1.bf16.msra.mxu0 0
  %64 = vmatprep.subr.bf16.mxu0 0
  %65 = vmatpush1.bf16.msra.mxu0 0
  %66 = vmatprep.subr.bf16.mxu0 0
  %67 = vmatpush1.bf16.msra.mxu0 0
  %68 = vmatprep.subr.bf16.mxu0 0
  %69 = vmatpush1.bf16.msra.mxu0 0
  %70 = vmatprep.subr.bf16.mxu0 0
  %71 = vmatpush1.bf16.msra.mxu0 0
  %72 = vmatprep.subr.bf16.mxu0 0
  %73 = vmatpush1.bf16.msra.mxu0 0
  %74 = vmatprep.subr.bf16.mxu0 0
  %75 = vmatpush1.bf16.msra.mxu0 0
  %76 = vmatprep.subr.bf16.mxu0 0
  %77 = vmatpush1.bf16.msra.mxu0 0
  %78 = vmatprep.subr.bf16.mxu0 0
  %79 = vmatpush1.bf16.msra.mxu0 0
  %80 = vmatprep.subr.bf16.mxu0 0
  %81 = vmatpush1.bf16.msra.mxu0 0
  %82 = vmatprep.subr.bf16.mxu0 0
  %83 = vmatpush1.bf16.msra.mxu0 0
  %84 = vmatprep.subr.bf16.mxu0 0
  %85 = vmatpush1.bf16.msra.mxu0 0
  %86 = vmatprep.subr.bf16.mxu0 0
  %87 = vmatpush1.bf16.msra.mxu0 0
  %88 = vmatprep.mubr.bf16.mxu0 0
  %89 = vmatmul.mubr.bf16.gmra.mrb[0].mxu0 %v50
  %v90 = vpop.f32.mrb[0].mxu0
  %v91 = vadd.f32 %v46, %v90
  %v92 = vpop.f32.mrb[0].mxu0
  %v93 = vpop.f32.mrb[0].mxu0
  %v94 = vpop.f32.mrb[0].mxu0
  %95 = vdwg.mxu0
  %v96 = vpack.c.bf16 %v38, %v38
  %v98 = vsel %vm52, %v96, 0
  %100 = vmatprep.subr.bf16.mxu0 0
  %101 = vmatpush1.bf16.msra.mxu0 %v98
  %102 = vmatprep.subr.bf16.mxu0 0
  %103 = vmatpush1.bf16.msra.mxu0 0
  %104 = vmatprep.subr.bf16.mxu0 0
  %105 = vmatpush1.bf16.msra.mxu0 0
  %106 = vmatprep.subr.bf16.mxu0 0
  %107 = vmatpush1.bf16.msra.mxu0 0
  %108 = vmatprep.subr.bf16.mxu0 0
  %109 = vmatpush1.bf16.msra.mxu0 0
  %110 = vmatprep.subr.bf16.mxu0 0
  %111 = vmatpush1.bf16.msra.mxu0 0
  %112 = vmatprep.subr.bf16.mxu0 0
  %113 = vmatpush1.bf16.msra.mxu0 0
  %114 = vmatprep.subr.bf16.mxu0 0
  %115 = vmatpush1.bf16.msra.mxu0 0
  %116 = vmatprep.subr.bf16.mxu0 0
  %117 = vmatpush1.bf16.msra.mxu0 0
  %118 = vmatprep.subr.bf16.mxu0 0
  %119 = vmatpush1.bf16.msra.mxu0 0
  %120 = vmatprep.subr.bf16.mxu0 0
  %121 = vmatpush1.bf16.msra.mxu0 0
  %122 = vmatprep.subr.bf16.mxu0 0
  %123 = vmatpush1.bf16.msra.mxu0 0
  %124 = vmatprep.subr.bf16.mxu0 0
  %125 = vmatpush1.bf16.msra.mxu0 0
  %126 = vmatprep.subr.bf16.mxu0 0
  %127 = vmatpush1.bf16.msra.mxu0 0
  %128 = vmatprep.subr.bf16.mxu0 0
  %129 = vmatpush1.bf16.msra.mxu0 0
  %130 = vmatprep.subr.bf16.mxu0 0
  %131 = vmatpush1.bf16.msra.mxu0 0
  %132 = vmatprep.mubr.bf16.mxu0 0
  %133 = vmatmul.mubr.bf16.gmra.mrb[0].mxu0 %v50
  %v134 = vpop.f32.mrb[0].mxu0
  %v135 = vadd.f32 %v46, %v134
  %v136 = vpop.f32.mrb[0].mxu0
  %v137 = vpop.f32.mrb[0].mxu0
  %v138 = vpop.f32.mrb[0].mxu0
  %139 = vdwg.mxu0
  %v140 = vmax.f32 %v91, 0.0
  %v141 = vmax.f32 %v135, 0.0
  %v142 = vmax.f32 %v35, %v36
  %v143 = vadd.s32 %v34, 4294967295
  %vm144 = vcmp.ge.s32.totalorder %v143, 0
  %vm145 = vcmp.lt.s32.totalorder %v143, 8
  %vm146 = vmand %vm144, %vm145
  %148 = vrot.lane.b32.xlu0 %v36, 1
  %v149 = vpop.permute.xlu0 %148
  %v151 = vsel %vm146, 1, 0
  %vm152 = vcmp.eq.s32.totalorder %v151, 1
  %v153 = vsel %vm152, %v149, -1e+30
  %v154 = vmax.f32 %v142, %v153
  %v155 = vmax.f32 %v91, %v135
  %157 = vrot.lane.b32.xlu0 %v135, 1
  %v158 = vpop.permute.xlu0 %157
  %v160 = vsel %vm152, %v158, -1e+30
  %v161 = vmax.f32 %v155, %v160
  %v162 = vld [vmem:[%s3] sm:$0xff]
  %164 = vrot.lane.b32.xlu0 %v37, 1
  %v165 = vpop.permute.xlu0 %164
  %v167 = vsel %vm152, %v165, 0.0
  %169 = vset.pattern.permute.xlu0 0
  %170 = vperm.xlu0 %169, %v162
  %v171 = vpop.permute.xlu0 %170
  %v173 = vmul.f32 %v171, %v167
  %175 = vrot.lane.b32.xlu0 %v38, 1
  %v176 = vpop.permute.xlu0 %175
  %v178 = vsel %vm152, %v176, 0.0
  %179 = vset.pattern.permute.xlu0 1
  %180 = vperm.xlu0 %179, %v162
  %v181 = vpop.permute.xlu0 %180
  %v183 = vmul.f32 %v181, %v178
  %184 = vset.pattern.permute.xlu0 2
  %185 = vperm.xlu0 %184, %v162
  %v186 = vpop.permute.xlu0 %185
  %v188 = vmul.f32 %v186, %v37
  %189 = vset.pattern.permute.xlu0 3
  %190 = vperm.xlu0 %189, %v162
  %v191 = vpop.permute.xlu0 %190
  %v193 = vmul.f32 %v191, %v38
  %v194 = vadd.s32 %v34, 1
  %vm195 = vcmp.ge.s32.totalorder %v194, 0
  %vm196 = vcmp.lt.s32.totalorder %v194, 8
  %vm197 = vmand %vm195, %vm196
  %198 = vrot.lane.b32.xlu0 %v37, 127
  %v199 = vpop.permute.xlu0 %198
  %v201 = vsel %vm197, 1, 0
  %vm202 = vcmp.eq.s32.totalorder %v201, 1
  %v203 = vsel %vm202, %v199, 0.0
  %204 = vset.pattern.permute.xlu0 4
  %205 = vperm.xlu0 %204, %v162
  %v206 = vpop.permute.xlu0 %205
  %v208 = vmul.f32 %v206, %v203
  %v209 = vadd.f32 %v173, %v183
  %v210 = vadd.f32 %v188, %v193
  %v211 = vadd.f32 %v209, %v210
  %v212 = vadd.f32 %v211, %v208
  %v213 = vld [vmem:[%s2 + $0x18] sm:$0xff]
  %v214 = vpack.c.bf16 %v213, %v213
  %v215 = vpack.c.bf16 %v212, %v212
  %216 = vset.pattern.permute.xlu0 3
  %217 = vperm.xlu0 %216, %v42
  %v218 = vpop.permute.xlu0 %217
  %v221 = vsel %vm48, %v214, 0
  %v224 = vsel %vm52, %v215, 0
  %226 = vmatprep.subr.bf16.mxu0 0
  %227 = vmatpush1.bf16.msra.mxu0 %v224
  %228 = vmatprep.subr.bf16.mxu0 0
  %229 = vmatpush1.bf16.msra.mxu0 0
  %230 = vmatprep.subr.bf16.mxu0 0
  %231 = vmatpush1.bf16.msra.mxu0 0
  %232 = vmatprep.subr.bf16.mxu0 0
  %233 = vmatpush1.bf16.msra.mxu0 0
  %234 = vmatprep.subr.bf16.mxu0 0
  %235 = vmatpush1.bf16.msra.mxu0 0
  %236 = vmatprep.subr.bf16.mxu0 0
  %237 = vmatpush1.bf16.msra.mxu0 0
  %238 = vmatprep.subr.bf16.mxu0 0
  %239 = vmatpush1.bf16.msra.mxu0 0
  %240 = vmatprep.subr.bf16.mxu0 0
  %241 = vmatpush1.bf16.msra.mxu0 0
  %242 = vmatprep.subr.bf16.mxu0 0
  %243 = vmatpush1.bf16.msra.mxu0 0
  %244 = vmatprep.subr.bf16.mxu0 0
  %245 = vmatpush1.bf16.msra.mxu0 0
  %246 = vmatprep.subr.bf16.mxu0 0
  %247 = vmatpush1.bf16.msra.mxu0 0
  %248 = vmatprep.subr.bf16.mxu0 0
  %249 = vmatpush1.bf16.msra.mxu0 0
  %250 = vmatprep.subr.bf16.mxu0 0
  %251 = vmatpush1.bf16.msra.mxu0 0
  %252 = vmatprep.subr.bf16.mxu0 0
  %253 = vmatpush1.bf16.msra.mxu0 0
  %254 = vmatprep.subr.bf16.mxu0 0
  %255 = vmatpush1.bf16.msra.mxu0 0
  %256 = vmatprep.subr.bf16.mxu0 0
  %257 = vmatpush1.bf16.msra.mxu0 0
  %258 = vmatprep.mubr.bf16.mxu0 0
  %259 = vmatmul.mubr.bf16.gmra.mrb[0].mxu0 %v221
  %v260 = vpop.f32.mrb[0].mxu0
  %v261 = vadd.f32 %v218, %v260
  %v262 = vpop.f32.mrb[0].mxu0
  %v263 = vpop.f32.mrb[0].mxu0
  %v264 = vpop.f32.mrb[0].mxu0
  %265 = vdwg.mxu0
  %v266 = vmax.f32 %v261, 0.0
  %v267 = vld [vmem:[%s3 + $0x8] sm:$0xff]
  %v268 = vadd.s32 %v34, 4294967294
  %vm269 = vcmp.ge.s32.totalorder %v268, 0
  %vm270 = vcmp.lt.s32.totalorder %v268, 8
  %vm271 = vmand %vm269, %vm270
  %273 = vrot.lane.b32.xlu0 %v266, 2
  %v274 = vpop.permute.xlu0 %273
  %v276 = vsel %vm271, 1, 0
  %vm277 = vcmp.eq.s32.totalorder %v276, 1
  %v278 = vsel %vm277, %v274, 0.0
  %280 = vset.pattern.permute.xlu0 0
  %281 = vperm.xlu0 %280, %v267
  %v282 = vpop.permute.xlu0 %281
  %v284 = vmul.f32 %v282, %v278
  %285 = vrot.lane.b32.xlu0 %v266, 1
  %v286 = vpop.permute.xlu0 %285
  %v288 = vsel %vm152, %v286, 0.0
  %289 = vset.pattern.permute.xlu0 1
  %290 = vperm.xlu0 %289, %v267
  %v291 = vpop.permute.xlu0 %290
  %v293 = vmul.f32 %v291, %v288
  %294 = vset.pattern.permute.xlu0 2
  %295 = vperm.xlu0 %294, %v267
  %v296 = vpop.permute.xlu0 %295
  %v298 = vmul.f32 %v296, %v266
  %299 = vrot.lane.b32.xlu0 %v266, 127
  %v300 = vpop.permute.xlu0 %299
  %v302 = vsel %vm202, %v300, 0.0
  %303 = vset.pattern.permute.xlu0 3
  %304 = vperm.xlu0 %303, %v267
  %v305 = vpop.permute.xlu0 %304
  %v307 = vmul.f32 %v305, %v302
  %v308 = vadd.s32 %v34, 2
  %vm309 = vcmp.ge.s32.totalorder %v308, 0
  %vm310 = vcmp.lt.s32.totalorder %v308, 8
  %vm311 = vmand %vm309, %vm310
  %312 = vrot.lane.b32.xlu0 %v266, 126
  %v313 = vpop.permute.xlu0 %312
  %v315 = vsel %vm311, 1, 0
  %vm316 = vcmp.eq.s32.totalorder %v315, 1
  %v317 = vsel %vm316, %v313, 0.0
  %318 = vset.pattern.permute.xlu0 4
  %319 = vperm.xlu0 %318, %v267
  %v320 = vpop.permute.xlu0 %319
  %v322 = vmul.f32 %v320, %v317
  %v323 = vadd.f32 %v284, %v293
  %v324 = vadd.f32 %v298, %v307
  %v325 = vadd.f32 %v323, %v324
  %v326 = vadd.f32 %v325, %v322
  %v327 = vld [vmem:[%s2 + $0x20] sm:$0xff]
  %v328 = vpack.c.bf16 %v327, %v327
  %v329 = vpack.c.bf16 %v326, %v326
  %330 = vset.pattern.permute.xlu0 4
  %331 = vperm.xlu0 %330, %v42
  %v332 = vpop.permute.xlu0 %331
  %v335 = vsel %vm48, %v328, 0
  %v338 = vsel %vm52, %v329, 0
  %340 = vmatprep.subr.bf16.mxu0 0
  %341 = vmatpush1.bf16.msra.mxu0 %v338
  %342 = vmatprep.subr.bf16.mxu0 0
  %343 = vmatpush1.bf16.msra.mxu0 0
  %344 = vmatprep.subr.bf16.mxu0 0
  %345 = vmatpush1.bf16.msra.mxu0 0
  %346 = vmatprep.subr.bf16.mxu0 0
  %347 = vmatpush1.bf16.msra.mxu0 0
  %348 = vmatprep.subr.bf16.mxu0 0
  %349 = vmatpush1.bf16.msra.mxu0 0
  %350 = vmatprep.subr.bf16.mxu0 0
  %351 = vmatpush1.bf16.msra.mxu0 0
  %352 = vmatprep.subr.bf16.mxu0 0
  %353 = vmatpush1.bf16.msra.mxu0 0
  %354 = vmatprep.subr.bf16.mxu0 0
  %355 = vmatpush1.bf16.msra.mxu0 0
  %356 = vmatprep.subr.bf16.mxu0 0
  %357 = vmatpush1.bf16.msra.mxu0 0
  %358 = vmatprep.subr.bf16.mxu0 0
  %359 = vmatpush1.bf16.msra.mxu0 0
  %360 = vmatprep.subr.bf16.mxu0 0
  %361 = vmatpush1.bf16.msra.mxu0 0
  %362 = vmatprep.subr.bf16.mxu0 0
  %363 = vmatpush1.bf16.msra.mxu0 0
  %364 = vmatprep.subr.bf16.mxu0 0
  %365 = vmatpush1.bf16.msra.mxu0 0
  %366 = vmatprep.subr.bf16.mxu0 0
  %367 = vmatpush1.bf16.msra.mxu0 0
  %368 = vmatprep.subr.bf16.mxu0 0
  %369 = vmatpush1.bf16.msra.mxu0 0
  %370 = vmatprep.subr.bf16.mxu0 0
  %371 = vmatpush1.bf16.msra.mxu0 0
  %372 = vmatprep.mubr.bf16.mxu0 0
  %373 = vmatmul.mubr.bf16.gmra.mrb[0].mxu0 %v335
  %v374 = vpop.f32.mrb[0].mxu0
  %v375 = vadd.f32 %v332, %v374
  %v376 = vpop.f32.mrb[0].mxu0
  %v377 = vpop.f32.mrb[0].mxu0
  %v378 = vpop.f32.mrb[0].mxu0
  %379 = vdwg.mxu0
  %v380 = vld [vmem:[%s2 + $0x8] sm:$0xff]
  %v381 = vpack.c.bf16 %v380, %v380
  %v382 = vpack.c.bf16 %v154, %v154
  %383 = vset.pattern.permute.xlu0 1
  %384 = vperm.xlu0 %383, %v42
  %v385 = vpop.permute.xlu0 %384
  %v388 = vsel %vm48, %v381, 0
  %v391 = vsel %vm52, %v382, 0
  %393 = vmatprep.subr.bf16.mxu0 0
  %394 = vmatpush1.bf16.msra.mxu0 %v391
  %395 = vmatprep.subr.bf16.mxu0 0
  %396 = vmatpush1.bf16.msra.mxu0 0
  %397 = vmatprep.subr.bf16.mxu0 0
  %398 = vmatpush1.bf16.msra.mxu0 0
  %399 = vmatprep.subr.bf16.mxu0 0
  %400 = vmatpush1.bf16.msra.mxu0 0
  %401 = vmatprep.subr.bf16.mxu0 0
  %402 = vmatpush1.bf16.msra.mxu0 0
  %403 = vmatprep.subr.bf16.mxu0 0
  %404 = vmatpush1.bf16.msra.mxu0 0
  %405 = vmatprep.subr.bf16.mxu0 0
  %406 = vmatpush1.bf16.msra.mxu0 0
  %407 = vmatprep.subr.bf16.mxu0 0
  %408 = vmatpush1.bf16.msra.mxu0 0
  %409 = vmatprep.subr.bf16.mxu0 0
  %410 = vmatpush1.bf16.msra.mxu0 0
  %411 = vmatprep.subr.bf16.mxu0 0
  %412 = vmatpush1.bf16.msra.mxu0 0
  %413 = vmatprep.subr.bf16.mxu0 0
  %414 = vmatpush1.bf16.msra.mxu0 0
  %415 = vmatprep.subr.bf16.mxu0 0
  %416 = vmatpush1.bf16.msra.mxu0 0
  %417 = vmatprep.subr.bf16.mxu0 0
  %418 = vmatpush1.bf16.msra.mxu0 0
  %419 = vmatprep.subr.bf16.mxu0 0
  %420 = vmatpush1.bf16.msra.mxu0 0
  %421 = vmatprep.subr.bf16.mxu0 0
  %422 = vmatpush1.bf16.msra.mxu0 0
  %423 = vmatprep.subr.bf16.mxu0 0
  %424 = vmatpush1.bf16.msra.mxu0 0
  %425 = vmatprep.mubr.bf16.mxu0 0
  %426 = vmatmul.mubr.bf16.gmra.mrb[0].mxu0 %v388
  %v427 = vpop.f32.mrb[0].mxu0
  %v428 = vadd.f32 %v385, %v427
  %v429 = vpop.f32.mrb[0].mxu0
  %v430 = vpop.f32.mrb[0].mxu0
  %v431 = vpop.f32.mrb[0].mxu0
  %432 = vdwg.mxu0
  %v433 = vadd.f32 %v375, %v428
  %v434 = vld [vmem:[%s3 + $0x10] sm:$0xff]
  %436 = vrot.lane.b32.xlu0 %v141, 2
  %v437 = vpop.permute.xlu0 %436
  %v439 = vsel %vm277, %v437, 0.0
  %441 = vset.pattern.permute.xlu0 0
  %442 = vperm.xlu0 %441, %v434
  %v443 = vpop.permute.xlu0 %442
  %v445 = vmul.f32 %v443, %v439
  %447 = vrot.lane.b32.xlu0 %v140, 1
  %v448 = vpop.permute.xlu0 %447
  %v450 = vsel %vm152, %v448, 0.0
  %451 = vset.pattern.permute.xlu0 1
  %452 = vperm.xlu0 %451, %v434
  %v453 = vpop.permute.xlu0 %452
  %v455 = vmul.f32 %v453, %v450
  %456 = vrot.lane.b32.xlu0 %v141, 1
  %v457 = vpop.permute.xlu0 %456
  %v459 = vsel %vm152, %v457, 0.0
  %460 = vset.pattern.permute.xlu0 2
  %461 = vperm.xlu0 %460, %v434
  %v462 = vpop.permute.xlu0 %461
  %v464 = vmul.f32 %v462, %v459
  %465 = vset.pattern.permute.xlu0 3
  %466 = vperm.xlu0 %465, %v434
  %v467 = vpop.permute.xlu0 %466
  %v469 = vmul.f32 %v467, %v140
  %470 = vset.pattern.permute.xlu0 4
  %471 = vperm.xlu0 %470, %v434
  %v472 = vpop.permute.xlu0 %471
  %v474 = vmul.f32 %v472, %v141
  %475 = vrot.lane.b32.xlu0 %v140, 127
  %v476 = vpop.permute.xlu0 %475
  %v478 = vsel %vm202, %v476, 0.0
  %479 = vset.pattern.permute.xlu0 5
  %480 = vperm.xlu0 %479, %v434
  %v481 = vpop.permute.xlu0 %480
  %v483 = vmul.f32 %v481, %v478
  %484 = vrot.lane.b32.xlu0 %v141, 127
  %v485 = vpop.permute.xlu0 %484
  %v487 = vsel %vm202, %v485, 0.0
  %488 = vset.pattern.permute.xlu0 6
  %489 = vperm.xlu0 %488, %v434
  %v490 = vpop.permute.xlu0 %489
  %v492 = vmul.f32 %v490, %v487
  %v493 = vadd.f32 %v445, %v455
  %v494 = vadd.f32 %v464, %v469
  %v495 = vadd.f32 %v474, %v483
  %v496 = vadd.f32 %v493, %v494
  %v497 = vadd.f32 %v495, %v492
  %v498 = vadd.f32 %v496, %v497
  %v499 = vld [vmem:[%s2 + $0x28] sm:$0xff]
  %v500 = vpack.c.bf16 %v499, %v499
  %v501 = vpack.c.bf16 %v498, %v498
  %502 = vset.pattern.permute.xlu0 5
  %503 = vperm.xlu0 %502, %v42
  %v504 = vpop.permute.xlu0 %503
  %v507 = vsel %vm48, %v500, 0
  %v510 = vsel %vm52, %v501, 0
  %512 = vmatprep.subr.bf16.mxu0 0
  %513 = vmatpush1.bf16.msra.mxu0 %v510
  %514 = vmatprep.subr.bf16.mxu0 0
  %515 = vmatpush1.bf16.msra.mxu0 0
  %516 = vmatprep.subr.bf16.mxu0 0
  %517 = vmatpush1.bf16.msra.mxu0 0
  %518 = vmatprep.subr.bf16.mxu0 0
  %519 = vmatpush1.bf16.msra.mxu0 0
  %520 = vmatprep.subr.bf16.mxu0 0
  %521 = vmatpush1.bf16.msra.mxu0 0
  %522 = vmatprep.subr.bf16.mxu0 0
  %523 = vmatpush1.bf16.msra.mxu0 0
  %524 = vmatprep.subr.bf16.mxu0 0
  %525 = vmatpush1.bf16.msra.mxu0 0
  %526 = vmatprep.subr.bf16.mxu0 0
  %527 = vmatpush1.bf16.msra.mxu0 0
  %528 = vmatprep.subr.bf16.mxu0 0
  %529 = vmatpush1.bf16.msra.mxu0 0
  %530 = vmatprep.subr.bf16.mxu0 0
  %531 = vmatpush1.bf16.msra.mxu0 0
  %532 = vmatprep.subr.bf16.mxu0 0
  %533 = vmatpush1.bf16.msra.mxu0 0
  %534 = vmatprep.subr.bf16.mxu0 0
  %535 = vmatpush1.bf16.msra.mxu0 0
  %536 = vmatprep.subr.bf16.mxu0 0
  %537 = vmatpush1.bf16.msra.mxu0 0
  %538 = vmatprep.subr.bf16.mxu0 0
  %539 = vmatpush1.bf16.msra.mxu0 0
  %540 = vmatprep.subr.bf16.mxu0 0
  %541 = vmatpush1.bf16.msra.mxu0 0
  %542 = vmatprep.subr.bf16.mxu0 0
  %543 = vmatpush1.bf16.msra.mxu0 0
  %544 = vmatprep.mubr.bf16.mxu0 0
  %545 = vmatmul.mubr.bf16.gmra.mrb[0].mxu0 %v507
  %v546 = vpop.f32.mrb[0].mxu0
  %v547 = vadd.f32 %v504, %v546
  %v548 = vpop.f32.mrb[0].mxu0
  %v549 = vpop.f32.mrb[0].mxu0
  %v550 = vpop.f32.mrb[0].mxu0
  %551 = vdwg.mxu0
  %v552 = vmax.f32 %v547, 0.0
  %v553 = vld [vmem:[%s3 + $0x18] sm:$0xff]
  %v554 = vadd.s32 %v34, 4294967293
  %vm555 = vcmp.ge.s32.totalorder %v554, 0
  %vm556 = vcmp.lt.s32.totalorder %v554, 8
  %vm557 = vmand %vm555, %vm556
  %559 = vrot.lane.b32.xlu0 %v552, 3
  %v560 = vpop.permute.xlu0 %559
  %v562 = vsel %vm557, 1, 0
  %vm563 = vcmp.eq.s32.totalorder %v562, 1
  %v564 = vsel %vm563, %v560, 0.0
  %566 = vset.pattern.permute.xlu0 0
  %567 = vperm.xlu0 %566, %v553
  %v568 = vpop.permute.xlu0 %567
  %v570 = vmul.f32 %v568, %v564
  %571 = vrot.lane.b32.xlu0 %v552, 2
  %v572 = vpop.permute.xlu0 %571
  %v574 = vsel %vm277, %v572, 0.0
  %575 = vset.pattern.permute.xlu0 1
  %576 = vperm.xlu0 %575, %v553
  %v577 = vpop.permute.xlu0 %576
  %v579 = vmul.f32 %v577, %v574
  %580 = vrot.lane.b32.xlu0 %v552, 1
  %v581 = vpop.permute.xlu0 %580
  %v583 = vsel %vm152, %v581, 0.0
  %584 = vset.pattern.permute.xlu0 2
  %585 = vperm.xlu0 %584, %v553
  %v586 = vpop.permute.xlu0 %585
  %v588 = vmul.f32 %v586, %v583
  %589 = vset.pattern.permute.xlu0 3
  %590 = vperm.xlu0 %589, %v553
  %v591 = vpop.permute.xlu0 %590
  %v593 = vmul.f32 %v591, %v552
  %594 = vrot.lane.b32.xlu0 %v552, 127
  %v595 = vpop.permute.xlu0 %594
  %v597 = vsel %vm202, %v595, 0.0
  %598 = vset.pattern.permute.xlu0 4
  %599 = vperm.xlu0 %598, %v553
  %v600 = vpop.permute.xlu0 %599
  %v602 = vmul.f32 %v600, %v597
  %603 = vrot.lane.b32.xlu0 %v552, 126
  %v604 = vpop.permute.xlu0 %603
  %v606 = vsel %vm316, %v604, 0.0
  %607 = vset.pattern.permute.xlu0 5
  %608 = vperm.xlu0 %607, %v553
  %v609 = vpop.permute.xlu0 %608
  %v611 = vmul.f32 %v609, %v606
  %v612 = vadd.s32 %v34, 3
  %vm613 = vcmp.ge.s32.totalorder %v612, 0
  %vm614 = vcmp.lt.s32.totalorder %v612, 8
  %vm615 = vmand %vm613, %vm614
  %616 = vrot.lane.b32.xlu0 %v552, 125
  %v617 = vpop.permute.xlu0 %616
  %v619 = vsel %vm615, 1, 0
  %vm620 = vcmp.eq.s32.totalorder %v619, 1
  %v621 = vsel %vm620, %v617, 0.0
  %622 = vset.pattern.permute.xlu0 6
  %623 = vperm.xlu0 %622, %v553
  %v624 = vpop.permute.xlu0 %623
  %v626 = vmul.f32 %v624, %v621
  %v627 = vadd.f32 %v570, %v579
  %v628 = vadd.f32 %v588, %v593
  %v629 = vadd.f32 %v602, %v611
  %v630 = vadd.f32 %v627, %v628
  %v631 = vadd.f32 %v629, %v626
  %v632 = vadd.f32 %v630, %v631
  %v633 = vld [vmem:[%s2 + $0x30] sm:$0xff]
  %v634 = vpack.c.bf16 %v633, %v633
  %v635 = vpack.c.bf16 %v632, %v632
  %636 = vset.pattern.permute.xlu0 6
  %637 = vperm.xlu0 %636, %v42
  %v638 = vpop.permute.xlu0 %637
  %v641 = vsel %vm48, %v634, 0
  %v644 = vsel %vm52, %v635, 0
  %646 = vmatprep.subr.bf16.mxu0 0
  %647 = vmatpush1.bf16.msra.mxu0 %v644
  %648 = vmatprep.subr.bf16.mxu0 0
  %649 = vmatpush1.bf16.msra.mxu0 0
  %650 = vmatprep.subr.bf16.mxu0 0
  %651 = vmatpush1.bf16.msra.mxu0 0
  %652 = vmatprep.subr.bf16.mxu0 0
  %653 = vmatpush1.bf16.msra.mxu0 0
  %654 = vmatprep.subr.bf16.mxu0 0
  %655 = vmatpush1.bf16.msra.mxu0 0
  %656 = vmatprep.subr.bf16.mxu0 0
  %657 = vmatpush1.bf16.msra.mxu0 0
  %658 = vmatprep.subr.bf16.mxu0 0
  %659 = vmatpush1.bf16.msra.mxu0 0
  %660 = vmatprep.subr.bf16.mxu0 0
  %661 = vmatpush1.bf16.msra.mxu0 0
  %662 = vmatprep.subr.bf16.mxu0 0
  %663 = vmatpush1.bf16.msra.mxu0 0
  %664 = vmatprep.subr.bf16.mxu0 0
  %665 = vmatpush1.bf16.msra.mxu0 0
  %666 = vmatprep.subr.bf16.mxu0 0
  %667 = vmatpush1.bf16.msra.mxu0 0
  %668 = vmatprep.subr.bf16.mxu0 0
  %669 = vmatpush1.bf16.msra.mxu0 0
  %670 = vmatprep.subr.bf16.mxu0 0
  %671 = vmatpush1.bf16.msra.mxu0 0
  %672 = vmatprep.subr.bf16.mxu0 0
  %673 = vmatpush1.bf16.msra.mxu0 0
  %674 = vmatprep.subr.bf16.mxu0 0
  %675 = vmatpush1.bf16.msra.mxu0 0
  %676 = vmatprep.subr.bf16.mxu0 0
  %677 = vmatpush1.bf16.msra.mxu0 0
  %678 = vmatprep.mubr.bf16.mxu0 0
  %679 = vmatmul.mubr.bf16.gmra.mrb[0].mxu0 %v641
  %v680 = vpop.f32.mrb[0].mxu0
  %v681 = vadd.f32 %v638, %v680
  %v682 = vpop.f32.mrb[0].mxu0
  %v683 = vpop.f32.mrb[0].mxu0
  %v684 = vpop.f32.mrb[0].mxu0
  %685 = vdwg.mxu0
  %v686 = vadd.f32 %v681, %v161
  %v687 = vld [vmem:[%s3 + $0x20] sm:$0xff]
  %689 = vset.pattern.permute.xlu0 0
  %690 = vperm.xlu0 %689, %v687
  %v691 = vpop.permute.xlu0 %690
  %v693 = vmul.f32 %v691, %v450
  %694 = vset.pattern.permute.xlu0 1
  %695 = vperm.xlu0 %694, %v687
  %v696 = vpop.permute.xlu0 %695
  %v698 = vmul.f32 %v696, %v459
  %699 = vset.pattern.permute.xlu0 2
  %700 = vperm.xlu0 %699, %v687
  %v701 = vpop.permute.xlu0 %700
  %v703 = vmul.f32 %v701, %v140
  %704 = vset.pattern.permute.xlu0 3
  %705 = vperm.xlu0 %704, %v687
  %v706 = vpop.permute.xlu0 %705
  %v708 = vmul.f32 %v706, %v141
  %709 = vset.pattern.permute.xlu0 4
  %710 = vperm.xlu0 %709, %v687
  %v711 = vpop.permute.xlu0 %710
  %v713 = vmul.f32 %v711, %v478
  %v714 = vadd.f32 %v693, %v698
  %v715 = vadd.f32 %v703, %v708
  %v716 = vadd.f32 %v714, %v715
  %v717 = vadd.f32 %v716, %v713
  %v718 = vld [vmem:[%s2 + $0x38] sm:$0xff]
  %v719 = vpack.c.bf16 %v718, %v718
  %v720 = vpack.c.bf16 %v717, %v717
  %721 = vset.pattern.permute.xlu0 7
  %722 = vperm.xlu0 %721, %v42
  %v723 = vpop.permute.xlu0 %722
  %v726 = vsel %vm48, %v719, 0
  %v729 = vsel %vm52, %v720, 0
  %731 = vmatprep.subr.bf16.mxu0 0
  %732 = vmatpush1.bf16.msra.mxu0 %v729
  %733 = vmatprep.subr.bf16.mxu0 0
  %734 = vmatpush1.bf16.msra.mxu0 0
  %735 = vmatprep.subr.bf16.mxu0 0
  %736 = vmatpush1.bf16.msra.mxu0 0
  %737 = vmatprep.subr.bf16.mxu0 0
  %738 = vmatpush1.bf16.msra.mxu0 0
  %739 = vmatprep.subr.bf16.mxu0 0
  %740 = vmatpush1.bf16.msra.mxu0 0
  %741 = vmatprep.subr.bf16.mxu0 0
  %742 = vmatpush1.bf16.msra.mxu0 0
  %743 = vmatprep.subr.bf16.mxu0 0
  %744 = vmatpush1.bf16.msra.mxu0 0
  %745 = vmatprep.subr.bf16.mxu0 0
  %746 = vmatpush1.bf16.msra.mxu0 0
  %747 = vmatprep.subr.bf16.mxu0 0
  %748 = vmatpush1.bf16.msra.mxu0 0
  %749 = vmatprep.subr.bf16.mxu0 0
  %750 = vmatpush1.bf16.msra.mxu0 0
  %751 = vmatprep.subr.bf16.mxu0 0
  %752 = vmatpush1.bf16.msra.mxu0 0
  %753 = vmatprep.subr.bf16.mxu0 0
  %754 = vmatpush1.bf16.msra.mxu0 0
  %755 = vmatprep.subr.bf16.mxu0 0
  %756 = vmatpush1.bf16.msra.mxu0 0
  %757 = vmatprep.subr.bf16.mxu0 0
  %758 = vmatpush1.bf16.msra.mxu0 0
  %759 = vmatprep.subr.bf16.mxu0 0
  %760 = vmatpush1.bf16.msra.mxu0 0
  %761 = vmatprep.subr.bf16.mxu0 0
  %762 = vmatpush1.bf16.msra.mxu0 0
  %763 = vmatprep.mubr.bf16.mxu0 0
  %764 = vmatmul.mubr.bf16.gmra.mrb[0].mxu0 %v726
  %v765 = vpop.f32.mrb[0].mxu0
  %v766 = vadd.f32 %v723, %v765
  %v767 = vpop.f32.mrb[0].mxu0
  %v768 = vpop.f32.mrb[0].mxu0
  %v769 = vpop.f32.mrb[0].mxu0
  %770 = vdwg.mxu0
  %v771 = vmax.f32 %v766, 0.0
  %v772 = vld [vmem:[%s3 + $0x28] sm:$0xff]
  %774 = vrot.lane.b32.xlu0 %v771, 2
  %v775 = vpop.permute.xlu0 %774
  %v777 = vsel %vm277, %v775, 0.0
  %779 = vset.pattern.permute.xlu0 0
  %780 = vperm.xlu0 %779, %v772
  %v781 = vpop.permute.xlu0 %780
  %v783 = vmul.f32 %v781, %v777
  %784 = vrot.lane.b32.xlu0 %v771, 1
  %v785 = vpop.permute.xlu0 %784
  %v787 = vsel %vm152, %v785, 0.0
  %788 = vset.pattern.permute.xlu0 1
  %789 = vperm.xlu0 %788, %v772
  %v790 = vpop.permute.xlu0 %789
  %v792 = vmul.f32 %v790, %v787
  %793 = vset.pattern.permute.xlu0 2
  %794 = vperm.xlu0 %793, %v772
  %v795 = vpop.permute.xlu0 %794
  %v797 = vmul.f32 %v795, %v771
  %798 = vrot.lane.b32.xlu0 %v771, 127
  %v799 = vpop.permute.xlu0 %798
  %v801 = vsel %vm202, %v799, 0.0
  %802 = vset.pattern.permute.xlu0 3
  %803 = vperm.xlu0 %802, %v772
  %v804 = vpop.permute.xlu0 %803
  %v806 = vmul.f32 %v804, %v801
  %807 = vrot.lane.b32.xlu0 %v771, 126
  %v808 = vpop.permute.xlu0 %807
  %v810 = vsel %vm316, %v808, 0.0
  %811 = vset.pattern.permute.xlu0 4
  %812 = vperm.xlu0 %811, %v772
  %v813 = vpop.permute.xlu0 %812
  %v815 = vmul.f32 %v813, %v810
  %v816 = vadd.f32 %v783, %v792
  %v817 = vadd.f32 %v797, %v806
  %v818 = vadd.f32 %v816, %v817
  %v819 = vadd.f32 %v818, %v815
  %v820 = vld [vmem:[%s2 + $0x40] sm:$0xff]
  %v821 = vpack.c.bf16 %v820, %v820
  %v822 = vpack.c.bf16 %v819, %v819
  %823 = vset.pattern.permute.xlu0 8
  %824 = vperm.xlu0 %823, %v42
  %v825 = vpop.permute.xlu0 %824
  %v828 = vsel %vm48, %v821, 0
  %v831 = vsel %vm52, %v822, 0
  %833 = vmatprep.subr.bf16.mxu0 0
  %834 = vmatpush1.bf16.msra.mxu0 %v831
  %835 = vmatprep.subr.bf16.mxu0 0
  %836 = vmatpush1.bf16.msra.mxu0 0
  %837 = vmatprep.subr.bf16.mxu0 0
  %838 = vmatpush1.bf16.msra.mxu0 0
  %839 = vmatprep.subr.bf16.mxu0 0
  %840 = vmatpush1.bf16.msra.mxu0 0
  %841 = vmatprep.subr.bf16.mxu0 0
  %842 = vmatpush1.bf16.msra.mxu0 0
  %843 = vmatprep.subr.bf16.mxu0 0
  %844 = vmatpush1.bf16.msra.mxu0 0
  %845 = vmatprep.subr.bf16.mxu0 0
  %846 = vmatpush1.bf16.msra.mxu0 0
  %847 = vmatprep.subr.bf16.mxu0 0
  %848 = vmatpush1.bf16.msra.mxu0 0
  %849 = vmatprep.subr.bf16.mxu0 0
  %850 = vmatpush1.bf16.msra.mxu0 0
  %851 = vmatprep.subr.bf16.mxu0 0
  %852 = vmatpush1.bf16.msra.mxu0 0
  %853 = vmatprep.subr.bf16.mxu0 0
  %854 = vmatpush1.bf16.msra.mxu0 0
  %855 = vmatprep.subr.bf16.mxu0 0
  %856 = vmatpush1.bf16.msra.mxu0 0
  %857 = vmatprep.subr.bf16.mxu0 0
  %858 = vmatpush1.bf16.msra.mxu0 0
  %859 = vmatprep.subr.bf16.mxu0 0
  %860 = vmatpush1.bf16.msra.mxu0 0
  %861 = vmatprep.subr.bf16.mxu0 0
  %862 = vmatpush1.bf16.msra.mxu0 0
  %863 = vmatprep.subr.bf16.mxu0 0
  %864 = vmatpush1.bf16.msra.mxu0 0
  %865 = vmatprep.mubr.bf16.mxu0 0
  %866 = vmatmul.mubr.bf16.gmra.mrb[0].mxu0 %v828
  %v867 = vpop.f32.mrb[0].mxu0
  %v868 = vadd.f32 %v825, %v867
  %v869 = vpop.f32.mrb[0].mxu0
  %v870 = vpop.f32.mrb[0].mxu0
  %v871 = vpop.f32.mrb[0].mxu0
  %872 = vdwg.mxu0
  %v873 = vld [vmem:[%s3 + $0x30] sm:$0xff]
  %875 = vset.pattern.permute.xlu0 0
  %876 = vperm.xlu0 %875, %v873
  %v877 = vpop.permute.xlu0 %876
  %v879 = vmul.f32 %v877, %v459
  %880 = vset.pattern.permute.xlu0 1
  %881 = vperm.xlu0 %880, %v873
  %v882 = vpop.permute.xlu0 %881
  %v884 = vmul.f32 %v882, %v140
  %885 = vset.pattern.permute.xlu0 2
  %886 = vperm.xlu0 %885, %v873
  %v887 = vpop.permute.xlu0 %886
  %v889 = vmul.f32 %v887, %v141
  %v890 = vadd.f32 %v879, %v884
  %v891 = vadd.f32 %v890, %v889
  %v892 = vld [vmem:[%s2 + $0x48] sm:$0xff]
  %v893 = vpack.c.bf16 %v892, %v892
  %v894 = vpack.c.bf16 %v891, %v891
  %895 = vset.pattern.permute.xlu0 9
  %896 = vperm.xlu0 %895, %v42
  %v897 = vpop.permute.xlu0 %896
  %v900 = vsel %vm48, %v893, 0
  %v903 = vsel %vm52, %v894, 0
  %905 = vmatprep.subr.bf16.mxu0 0
  %906 = vmatpush1.bf16.msra.mxu0 %v903
  %907 = vmatprep.subr.bf16.mxu0 0
  %908 = vmatpush1.bf16.msra.mxu0 0
  %909 = vmatprep.subr.bf16.mxu0 0
  %910 = vmatpush1.bf16.msra.mxu0 0
  %911 = vmatprep.subr.bf16.mxu0 0
  %912 = vmatpush1.bf16.msra.mxu0 0
  %913 = vmatprep.subr.bf16.mxu0 0
  %914 = vmatpush1.bf16.msra.mxu0 0
  %915 = vmatprep.subr.bf16.mxu0 0
  %916 = vmatpush1.bf16.msra.mxu0 0
  %917 = vmatprep.subr.bf16.mxu0 0
  %918 = vmatpush1.bf16.msra.mxu0 0
  %919 = vmatprep.subr.bf16.mxu0 0
  %920 = vmatpush1.bf16.msra.mxu0 0
  %921 = vmatprep.subr.bf16.mxu0 0
  %922 = vmatpush1.bf16.msra.mxu0 0
  %923 = vmatprep.subr.bf16.mxu0 0
  %924 = vmatpush1.bf16.msra.mxu0 0
  %925 = vmatprep.subr.bf16.mxu0 0
  %926 = vmatpush1.bf16.msra.mxu0 0
  %927 = vmatprep.subr.bf16.mxu0 0
  %928 = vmatpush1.bf16.msra.mxu0 0
  %929 = vmatprep.subr.bf16.mxu0 0
  %930 = vmatpush1.bf16.msra.mxu0 0
  %931 = vmatprep.subr.bf16.mxu0 0
  %932 = vmatpush1.bf16.msra.mxu0 0
  %933 = vmatprep.subr.bf16.mxu0 0
  %934 = vmatpush1.bf16.msra.mxu0 0
  %935 = vmatprep.subr.bf16.mxu0 0
  %936 = vmatpush1.bf16.msra.mxu0 0
  %937 = vmatprep.mubr.bf16.mxu0 0
  %938 = vmatmul.mubr.bf16.gmra.mrb[0].mxu0 %v900
  %v939 = vpop.f32.mrb[0].mxu0
  %v940 = vadd.f32 %v897, %v939
  %v941 = vpop.f32.mrb[0].mxu0
  %v942 = vpop.f32.mrb[0].mxu0
  %v943 = vpop.f32.mrb[0].mxu0
  %944 = vdwg.mxu0
  %v945 = vmax.f32 %v940, 0.0
  %v946 = vld [vmem:[%s3 + $0x38] sm:$0xff]
  %948 = vrot.lane.b32.xlu0 %v945, 1
  %v949 = vpop.permute.xlu0 %948
  %v951 = vsel %vm152, %v949, 0.0
  %953 = vset.pattern.permute.xlu0 0
  %954 = vperm.xlu0 %953, %v946
  %v955 = vpop.permute.xlu0 %954
  %v957 = vmul.f32 %v955, %v951
  %958 = vset.pattern.permute.xlu0 1
  %959 = vperm.xlu0 %958, %v946
  %v960 = vpop.permute.xlu0 %959
  %v962 = vmul.f32 %v960, %v945
  %963 = vrot.lane.b32.xlu0 %v945, 127
  %v964 = vpop.permute.xlu0 %963
  %v966 = vsel %vm202, %v964, 0.0
  %967 = vset.pattern.permute.xlu0 2
  %968 = vperm.xlu0 %967, %v946
  %v969 = vpop.permute.xlu0 %968
  %v971 = vmul.f32 %v969, %v966
  %v972 = vadd.f32 %v957, %v962
  %v973 = vadd.f32 %v972, %v971
  %v974 = vld [vmem:[%s2 + $0x50] sm:$0xff]
  %v975 = vpack.c.bf16 %v974, %v974
  %v976 = vpack.c.bf16 %v973, %v973
  %977 = vset.pattern.permute.xlu0 10
  %978 = vperm.xlu0 %977, %v42
  %v979 = vpop.permute.xlu0 %978
  %v982 = vsel %vm48, %v975, 0
  %v985 = vsel %vm52, %v976, 0
  %987 = vmatprep.subr.bf16.mxu0 0
  %988 = vmatpush1.bf16.msra.mxu0 %v985
  %989 = vmatprep.subr.bf16.mxu0 0
  %990 = vmatpush1.bf16.msra.mxu0 0
  %991 = vmatprep.subr.bf16.mxu0 0
  %992 = vmatpush1.bf16.msra.mxu0 0
  %993 = vmatprep.subr.bf16.mxu0 0
  %994 = vmatpush1.bf16.msra.mxu0 0
  %995 = vmatprep.subr.bf16.mxu0 0
  %996 = vmatpush1.bf16.msra.mxu0 0
  %997 = vmatprep.subr.bf16.mxu0 0
  %998 = vmatpush1.bf16.msra.mxu0 0
  %999 = vmatprep.subr.bf16.mxu0 0
  %1000 = vmatpush1.bf16.msra.mxu0 0
  %1001 = vmatprep.subr.bf16.mxu0 0
  %1002 = vmatpush1.bf16.msra.mxu0 0
  %1003 = vmatprep.subr.bf16.mxu0 0
  %1004 = vmatpush1.bf16.msra.mxu0 0
  %1005 = vmatprep.subr.bf16.mxu0 0
  %1006 = vmatpush1.bf16.msra.mxu0 0
  %1007 = vmatprep.subr.bf16.mxu0 0
  %1008 = vmatpush1.bf16.msra.mxu0 0
  %1009 = vmatprep.subr.bf16.mxu0 0
  %1010 = vmatpush1.bf16.msra.mxu0 0
  %1011 = vmatprep.subr.bf16.mxu0 0
  %1012 = vmatpush1.bf16.msra.mxu0 0
  %1013 = vmatprep.subr.bf16.mxu0 0
  %1014 = vmatpush1.bf16.msra.mxu0 0
  %1015 = vmatprep.subr.bf16.mxu0 0
  %1016 = vmatpush1.bf16.msra.mxu0 0
  %1017 = vmatprep.subr.bf16.mxu0 0
  %1018 = vmatpush1.bf16.msra.mxu0 0
  %1019 = vmatprep.mubr.bf16.mxu0 0
  %1020 = vmatmul.mubr.bf16.gmra.mrb[0].mxu0 %v982
  %v1021 = vpop.f32.mrb[0].mxu0
  %v1022 = vadd.f32 %v979, %v1021
  %v1023 = vpop.f32.mrb[0].mxu0
  %v1024 = vpop.f32.mrb[0].mxu0
  %v1025 = vpop.f32.mrb[0].mxu0
  %1026 = vdwg.mxu0
  %v1027 = vadd.f32 %v868, %v1022
  %v1028 = vmax.f32 %v1027, 0.0
  %v1029 = vld [vmem:[%s3 + $0x40] sm:$0xff]
  %1031 = vrot.lane.b32.xlu0 %v1028, 1
  %v1032 = vpop.permute.xlu0 %1031
  %v1034 = vsel %vm152, %v1032, 0.0
  %1036 = vset.pattern.permute.xlu0 0
  %1037 = vperm.xlu0 %1036, %v1029
  %v1038 = vpop.permute.xlu0 %1037
  %v1040 = vmul.f32 %v1038, %v1034
  %1041 = vset.pattern.permute.xlu0 1
  %1042 = vperm.xlu0 %1041, %v1029
  %v1043 = vpop.permute.xlu0 %1042
  %v1045 = vmul.f32 %v1043, %v1028
  %1046 = vrot.lane.b32.xlu0 %v1028, 127
  %v1047 = vpop.permute.xlu0 %1046
  %v1049 = vsel %vm202, %v1047, 0.0
  %1050 = vset.pattern.permute.xlu0 2
  %1051 = vperm.xlu0 %1050, %v1029
  %v1052 = vpop.permute.xlu0 %1051
  %v1054 = vmul.f32 %v1052, %v1049
  %v1055 = vadd.f32 %v1040, %v1045
  %v1056 = vadd.f32 %v1055, %v1054
  %v1057 = vld [vmem:[%s2 + $0x58] sm:$0xff]
  %v1058 = vpack.c.bf16 %v1057, %v1057
  %v1059 = vpack.c.bf16 %v1056, %v1056
  %1060 = vset.pattern.permute.xlu0 11
  %1061 = vperm.xlu0 %1060, %v42
  %v1062 = vpop.permute.xlu0 %1061
  %v1065 = vsel %vm48, %v1058, 0
  %v1068 = vsel %vm52, %v1059, 0
  %1070 = vmatprep.subr.bf16.mxu0 0
  %1071 = vmatpush1.bf16.msra.mxu0 %v1068
  %1072 = vmatprep.subr.bf16.mxu0 0
  %1073 = vmatpush1.bf16.msra.mxu0 0
  %1074 = vmatprep.subr.bf16.mxu0 0
  %1075 = vmatpush1.bf16.msra.mxu0 0
  %1076 = vmatprep.subr.bf16.mxu0 0
  %1077 = vmatpush1.bf16.msra.mxu0 0
  %1078 = vmatprep.subr.bf16.mxu0 0
  %1079 = vmatpush1.bf16.msra.mxu0 0
  %1080 = vmatprep.subr.bf16.mxu0 0
  %1081 = vmatpush1.bf16.msra.mxu0 0
  %1082 = vmatprep.subr.bf16.mxu0 0
  %1083 = vmatpush1.bf16.msra.mxu0 0
  %1084 = vmatprep.subr.bf16.mxu0 0
  %1085 = vmatpush1.bf16.msra.mxu0 0
  %1086 = vmatprep.subr.bf16.mxu0 0
  %1087 = vmatpush1.bf16.msra.mxu0 0
  %1088 = vmatprep.subr.bf16.mxu0 0
  %1089 = vmatpush1.bf16.msra.mxu0 0
  %1090 = vmatprep.subr.bf16.mxu0 0
  %1091 = vmatpush1.bf16.msra.mxu0 0
  %1092 = vmatprep.subr.bf16.mxu0 0
  %1093 = vmatpush1.bf16.msra.mxu0 0
  %1094 = vmatprep.subr.bf16.mxu0 0
  %1095 = vmatpush1.bf16.msra.mxu0 0
  %1096 = vmatprep.subr.bf16.mxu0 0
  %1097 = vmatpush1.bf16.msra.mxu0 0
  %1098 = vmatprep.subr.bf16.mxu0 0
  %1099 = vmatpush1.bf16.msra.mxu0 0
  %1100 = vmatprep.subr.bf16.mxu0 0
  %1101 = vmatpush1.bf16.msra.mxu0 0
  %1102 = vmatprep.mubr.bf16.mxu0 0
  %1103 = vmatmul.mubr.bf16.gmra.mrb[0].mxu0 %v1065
  %v1104 = vpop.f32.mrb[0].mxu0
  %v1105 = vadd.f32 %v1062, %v1104
  %v1106 = vpop.f32.mrb[0].mxu0
  %v1107 = vpop.f32.mrb[0].mxu0
  %v1108 = vpop.f32.mrb[0].mxu0
  %1109 = vdwg.mxu0
  %v1110 = vmax.f32 %v1105, 0.0
  %v1111 = vld [vmem:[%s3 + $0x48] sm:$0xff]
  %1113 = vrot.lane.b32.xlu0 %v1110, 1
  %v1114 = vpop.permute.xlu0 %1113
  %v1116 = vsel %vm152, %v1114, 0.0
  %1118 = vset.pattern.permute.xlu0 0
  %1119 = vperm.xlu0 %1118, %v1111
  %v1120 = vpop.permute.xlu0 %1119
  %v1122 = vmul.f32 %v1120, %v1116
  %1123 = vset.pattern.permute.xlu0 1
  %1124 = vperm.xlu0 %1123, %v1111
  %v1125 = vpop.permute.xlu0 %1124
  %v1127 = vmul.f32 %v1125, %v1110
  %1128 = vrot.lane.b32.xlu0 %v1110, 127
  %v1129 = vpop.permute.xlu0 %1128
  %v1131 = vsel %vm202, %v1129, 0.0
  %1132 = vset.pattern.permute.xlu0 2
  %1133 = vperm.xlu0 %1132, %v1111
  %v1134 = vpop.permute.xlu0 %1133
  %v1136 = vmul.f32 %v1134, %v1131
  %v1137 = vadd.f32 %v1122, %v1127
  %v1138 = vadd.f32 %v1137, %v1136
  %v1139 = vld [vmem:[%s2 + $0x60] sm:$0xff]
  %v1140 = vpack.c.bf16 %v1139, %v1139
  %v1141 = vpack.c.bf16 %v1138, %v1138
  %1142 = vset.pattern.permute.xlu0 12
  %1143 = vperm.xlu0 %1142, %v42
  %v1144 = vpop.permute.xlu0 %1143
  %v1147 = vsel %vm48, %v1140, 0
  %v1150 = vsel %vm52, %v1141, 0
  %1152 = vmatprep.subr.bf16.mxu0 0
  %1153 = vmatpush1.bf16.msra.mxu0 %v1150
  %1154 = vmatprep.subr.bf16.mxu0 0
  %1155 = vmatpush1.bf16.msra.mxu0 0
  %1156 = vmatprep.subr.bf16.mxu0 0
  %1157 = vmatpush1.bf16.msra.mxu0 0
  %1158 = vmatprep.subr.bf16.mxu0 0
  %1159 = vmatpush1.bf16.msra.mxu0 0
  %1160 = vmatprep.subr.bf16.mxu0 0
  %1161 = vmatpush1.bf16.msra.mxu0 0
  %1162 = vmatprep.subr.bf16.mxu0 0
  %1163 = vmatpush1.bf16.msra.mxu0 0
  %1164 = vmatprep.subr.bf16.mxu0 0
  %1165 = vmatpush1.bf16.msra.mxu0 0
  %1166 = vmatprep.subr.bf16.mxu0 0
  %1167 = vmatpush1.bf16.msra.mxu0 0
  %1168 = vmatprep.subr.bf16.mxu0 0
  %1169 = vmatpush1.bf16.msra.mxu0 0
  %1170 = vmatprep.subr.bf16.mxu0 0
  %1171 = vmatpush1.bf16.msra.mxu0 0
  %1172 = vmatprep.subr.bf16.mxu0 0
  %1173 = vmatpush1.bf16.msra.mxu0 0
  %1174 = vmatprep.subr.bf16.mxu0 0
  %1175 = vmatpush1.bf16.msra.mxu0 0
  %1176 = vmatprep.subr.bf16.mxu0 0
  %1177 = vmatpush1.bf16.msra.mxu0 0
  %1178 = vmatprep.subr.bf16.mxu0 0
  %1179 = vmatpush1.bf16.msra.mxu0 0
  %1180 = vmatprep.subr.bf16.mxu0 0
  %1181 = vmatpush1.bf16.msra.mxu0 0
  %1182 = vmatprep.subr.bf16.mxu0 0
  %1183 = vmatpush1.bf16.msra.mxu0 0
  %1184 = vmatprep.mubr.bf16.mxu0 0
  %1185 = vmatmul.mubr.bf16.gmra.mrb[0].mxu0 %v1147
  %v1186 = vpop.f32.mrb[0].mxu0
  %v1187 = vadd.f32 %v1144, %v1186
  %v1188 = vpop.f32.mrb[0].mxu0
  %v1189 = vpop.f32.mrb[0].mxu0
  %v1190 = vpop.f32.mrb[0].mxu0
  %1191 = vdwg.mxu0
  %v1192 = vadd.f32 %v1187, %v161
  %v1193 = vld [vmem:[%s3 + $0x50] sm:$0xff]
  %1195 = vset.pattern.permute.xlu0 0
  %1196 = vperm.xlu0 %1195, %v1193
  %v1197 = vpop.permute.xlu0 %1196
  %v1199 = vmul.f32 %v1197, %v178
  %1200 = vset.pattern.permute.xlu0 1
  %1201 = vperm.xlu0 %1200, %v1193
  %v1202 = vpop.permute.xlu0 %1201
  %v1204 = vmul.f32 %v1202, %v37
  %1205 = vset.pattern.permute.xlu0 2
  %1206 = vperm.xlu0 %1205, %v1193
  %v1207 = vpop.permute.xlu0 %1206
  %v1209 = vmul.f32 %v1207, %v38
  %v1210 = vadd.f32 %v1199, %v1204
  %v1211 = vadd.f32 %v1210, %v1209
  %v1212 = vld [vmem:[%s2 + $0x68] sm:$0xff]
  %v1213 = vpack.c.bf16 %v1212, %v1212
  %v1214 = vpack.c.bf16 %v1211, %v1211
  %1215 = vset.pattern.permute.xlu0 13
  %1216 = vperm.xlu0 %1215, %v42
  %v1217 = vpop.permute.xlu0 %1216
  %v1220 = vsel %vm48, %v1213, 0
  %v1223 = vsel %vm52, %v1214, 0
  %1225 = vmatprep.subr.bf16.mxu0 0
  %1226 = vmatpush1.bf16.msra.mxu0 %v1223
  %1227 = vmatprep.subr.bf16.mxu0 0
  %1228 = vmatpush1.bf16.msra.mxu0 0
  %1229 = vmatprep.subr.bf16.mxu0 0
  %1230 = vmatpush1.bf16.msra.mxu0 0
  %1231 = vmatprep.subr.bf16.mxu0 0
  %1232 = vmatpush1.bf16.msra.mxu0 0
  %1233 = vmatprep.subr.bf16.mxu0 0
  %1234 = vmatpush1.bf16.msra.mxu0 0
  %1235 = vmatprep.subr.bf16.mxu0 0
  %1236 = vmatpush1.bf16.msra.mxu0 0
  %1237 = vmatprep.subr.bf16.mxu0 0
  %1238 = vmatpush1.bf16.msra.mxu0 0
  %1239 = vmatprep.subr.bf16.mxu0 0
  %1240 = vmatpush1.bf16.msra.mxu0 0
  %1241 = vmatprep.subr.bf16.mxu0 0
  %1242 = vmatpush1.bf16.msra.mxu0 0
  %1243 = vmatprep.subr.bf16.mxu0 0
  %1244 = vmatpush1.bf16.msra.mxu0 0
  %1245 = vmatprep.subr.bf16.mxu0 0
  %1246 = vmatpush1.bf16.msra.mxu0 0
  %1247 = vmatprep.subr.bf16.mxu0 0
  %1248 = vmatpush1.bf16.msra.mxu0 0
  %1249 = vmatprep.subr.bf16.mxu0 0
  %1250 = vmatpush1.bf16.msra.mxu0 0
  %1251 = vmatprep.subr.bf16.mxu0 0
  %1252 = vmatpush1.bf16.msra.mxu0 0
  %1253 = vmatprep.subr.bf16.mxu0 0
  %1254 = vmatpush1.bf16.msra.mxu0 0
  %1255 = vmatprep.subr.bf16.mxu0 0
  %1256 = vmatpush1.bf16.msra.mxu0 0
  %1257 = vmatprep.mubr.bf16.mxu0 0
  %1258 = vmatmul.mubr.bf16.gmra.mrb[0].mxu0 %v1220
  %v1259 = vpop.f32.mrb[0].mxu0
  %v1260 = vadd.f32 %v1217, %v1259
  %v1261 = vpop.f32.mrb[0].mxu0
  %v1262 = vpop.f32.mrb[0].mxu0
  %v1263 = vpop.f32.mrb[0].mxu0
  %1264 = vdwg.mxu0
  %v1265 = vmax.f32 %v1260, 0.0
  %v1266 = vld [vmem:[%s3 + $0x58] sm:$0xff]
  %1268 = vrot.lane.b32.xlu0 %v1265, 1
  %v1269 = vpop.permute.xlu0 %1268
  %v1271 = vsel %vm152, %v1269, 0.0
  %1273 = vset.pattern.permute.xlu0 0
  %1274 = vperm.xlu0 %1273, %v1266
  %v1275 = vpop.permute.xlu0 %1274
  %v1277 = vmul.f32 %v1275, %v1271
  %1278 = vset.pattern.permute.xlu0 1
  %1279 = vperm.xlu0 %1278, %v1266
  %v1280 = vpop.permute.xlu0 %1279
  %v1282 = vmul.f32 %v1280, %v1265
  %1283 = vrot.lane.b32.xlu0 %v1265, 127
  %v1284 = vpop.permute.xlu0 %1283
  %v1286 = vsel %vm202, %v1284, 0.0
  %1287 = vset.pattern.permute.xlu0 2
  %1288 = vperm.xlu0 %1287, %v1266
  %v1289 = vpop.permute.xlu0 %1288
  %v1291 = vmul.f32 %v1289, %v1286
  %v1292 = vadd.f32 %v1277, %v1282
  %v1293 = vadd.f32 %v1292, %v1291
  %v1294 = vld [vmem:[%s2 + $0x70] sm:$0xff]
  %v1295 = vpack.c.bf16 %v1294, %v1294
  %v1296 = vpack.c.bf16 %v1293, %v1293
  %1297 = vset.pattern.permute.xlu0 14
  %1298 = vperm.xlu0 %1297, %v42
  %v1299 = vpop.permute.xlu0 %1298
  %v1302 = vsel %vm48, %v1295, 0
  %v1305 = vsel %vm52, %v1296, 0
  %1307 = vmatprep.subr.bf16.mxu0 0
  %1308 = vmatpush1.bf16.msra.mxu0 %v1305
  %1309 = vmatprep.subr.bf16.mxu0 0
  %1310 = vmatpush1.bf16.msra.mxu0 0
  %1311 = vmatprep.subr.bf16.mxu0 0
  %1312 = vmatpush1.bf16.msra.mxu0 0
  %1313 = vmatprep.subr.bf16.mxu0 0
  %1314 = vmatpush1.bf16.msra.mxu0 0
  %1315 = vmatprep.subr.bf16.mxu0 0
  %1316 = vmatpush1.bf16.msra.mxu0 0
  %1317 = vmatprep.subr.bf16.mxu0 0
  %1318 = vmatpush1.bf16.msra.mxu0 0
  %1319 = vmatprep.subr.bf16.mxu0 0
  %1320 = vmatpush1.bf16.msra.mxu0 0
  %1321 = vmatprep.subr.bf16.mxu0 0
  %1322 = vmatpush1.bf16.msra.mxu0 0
  %1323 = vmatprep.subr.bf16.mxu0 0
  %1324 = vmatpush1.bf16.msra.mxu0 0
  %1325 = vmatprep.subr.bf16.mxu0 0
  %1326 = vmatpush1.bf16.msra.mxu0 0
  %1327 = vmatprep.subr.bf16.mxu0 0
  %1328 = vmatpush1.bf16.msra.mxu0 0
  %1329 = vmatprep.subr.bf16.mxu0 0
  %1330 = vmatpush1.bf16.msra.mxu0 0
  %1331 = vmatprep.subr.bf16.mxu0 0
  %1332 = vmatpush1.bf16.msra.mxu0 0
  %1333 = vmatprep.subr.bf16.mxu0 0
  %1334 = vmatpush1.bf16.msra.mxu0 0
  %1335 = vmatprep.subr.bf16.mxu0 0
  %1336 = vmatpush1.bf16.msra.mxu0 0
  %1337 = vmatprep.subr.bf16.mxu0 0
  %1338 = vmatpush1.bf16.msra.mxu0 0
  %1339 = vmatprep.mubr.bf16.mxu0 0
  %1340 = vmatmul.mubr.bf16.gmra.mrb[0].mxu0 %v1302
  %v1341 = vpop.f32.mrb[0].mxu0
  %v1342 = vadd.f32 %v1299, %v1341
  %v1343 = vpop.f32.mrb[0].mxu0
  %v1344 = vpop.f32.mrb[0].mxu0
  %v1345 = vpop.f32.mrb[0].mxu0
  %1346 = vdwg.mxu0
  %v1347 = vld [vmem:[%s2 + $0x10] sm:$0xff]
  %v1348 = vpack.c.bf16 %v1347, %v1347
  %v1349 = vpack.c.bf16 %v140, %v140
  %1350 = vset.pattern.permute.xlu0 2
  %1351 = vperm.xlu0 %1350, %v42
  %v1352 = vpop.permute.xlu0 %1351
  %v1355 = vsel %vm48, %v1348, 0
  %v1358 = vsel %vm52, %v1349, 0
  %1360 = vmatprep.subr.bf16.mxu0 0
  %1361 = vmatpush1.bf16.msra.mxu0 %v1358
  %1362 = vmatprep.subr.bf16.mxu0 0
  %1363 = vmatpush1.bf16.msra.mxu0 0
  %1364 = vmatprep.subr.bf16.mxu0 0
  %1365 = vmatpush1.bf16.msra.mxu0 0
  %1366 = vmatprep.subr.bf16.mxu0 0
  %1367 = vmatpush1.bf16.msra.mxu0 0
  %1368 = vmatprep.subr.bf16.mxu0 0
  %1369 = vmatpush1.bf16.msra.mxu0 0
  %1370 = vmatprep.subr.bf16.mxu0 0
  %1371 = vmatpush1.bf16.msra.mxu0 0
  %1372 = vmatprep.subr.bf16.mxu0 0
  %1373 = vmatpush1.bf16.msra.mxu0 0
  %1374 = vmatprep.subr.bf16.mxu0 0
  %1375 = vmatpush1.bf16.msra.mxu0 0
  %1376 = vmatprep.subr.bf16.mxu0 0
  %1377 = vmatpush1.bf16.msra.mxu0 0
  %1378 = vmatprep.subr.bf16.mxu0 0
  %1379 = vmatpush1.bf16.msra.mxu0 0
  %1380 = vmatprep.subr.bf16.mxu0 0
  %1381 = vmatpush1.bf16.msra.mxu0 0
  %1382 = vmatprep.subr.bf16.mxu0 0
  %1383 = vmatpush1.bf16.msra.mxu0 0
  %1384 = vmatprep.subr.bf16.mxu0 0
  %1385 = vmatpush1.bf16.msra.mxu0 0
  %1386 = vmatprep.subr.bf16.mxu0 0
  %1387 = vmatpush1.bf16.msra.mxu0 0
  %1388 = vmatprep.subr.bf16.mxu0 0
  %1389 = vmatpush1.bf16.msra.mxu0 0
  %1390 = vmatprep.subr.bf16.mxu0 0
  %1391 = vmatpush1.bf16.msra.mxu0 0
  %1392 = vmatprep.mubr.bf16.mxu0 0
  %1393 = vmatmul.mubr.bf16.gmra.mrb[0].mxu0 %v1355
  %v1394 = vpop.f32.mrb[0].mxu0
  %v1395 = vadd.f32 %v1352, %v1394
  %v1396 = vpop.f32.mrb[0].mxu0
  %v1397 = vpop.f32.mrb[0].mxu0
  %v1398 = vpop.f32.mrb[0].mxu0
  %1399 = vdwg.mxu0
  %v1400 = vadd.f32 %v1342, %v1395
  %1401 = vst [vmem:[%s5] sm:$0xff] %v433
  %1402 = vst [vmem:[%s5 + $0x8] sm:$0xff] %v686
  %1403 = vst [vmem:[%s5 + $0x10] sm:$0xff] %v1027
  %1404 = vst [vmem:[%s5 + $0x18] sm:$0xff] %v1192
  %1405 = vst [vmem:[%s5 + $0x20] sm:$0xff] %v1400
  // Predicated region
  $region22: #{cell_stem0.1} parent=0 // pred_check
    _
  $region23: #{cell_stem0.1} parent=0 // pred_check_branch
    %1407 = sbr.rel (0) target = $region25
  $region24: #{cell_stem0.1} parent=0 // pred_region
    _
  $region25: #{cell_stem0.1} parent=0 // pred_fallthru
    _
  // Predicated region
  $region26: #{cell_stem0.1} parent=0 // pred_check
    _
  $region27: #{cell_stem0.1} parent=0 // pred_check_branch
    %1409 = sbr.rel (0) target = $region29
  $region28: #{cell_stem0.1} parent=0 // pred_region
    _
  $region29: #{cell_stem0.1} parent=0 // pred_fallthru
    _

</llo_original>
